<compile_context>
chip_gen: v6e
topology: v6e:2x2x1
jax: 0.10.0
libtpu: 0.0.40
codegen_flags: <defaults>
</compile_context>

<pallas_src>
import functools

import jax
import jax.numpy as jnp
from jax.experimental import pallas as pl
from jax.experimental.pallas import tpu as pltpu


def mlp3l_kernel(t_ref, x_ref, w1b1_ref, w2t_ref, w3b2_ref, b3_ref, o_ref):
    t_row = t_ref[...]                                   # (1, TN)
    x_row = x_ref[...]                                   # (1, TN)

    # Layer 1 on the VPU (degenerate K=2 matmul kept off the MXU):
    #   (d1, 1) * (1, TN) broadcasts -> (d1, TN); bias is column 2 of the packed block.
    h1 = (w1b1_ref[:, 0:1] * t_row
          + w1b1_ref[:, 1:2] * x_row
          + w1b1_ref[:, 2:3])
    h1 = jnp.maximum(h1, 0.0)                            # (d1, TN)

    # Layer 2 on the MXU (carries ~99% of the FLOPs): (d2, d1) @ (d1, TN).
    # Operands take w2's dtype (bf16 when enabled -> bf16-native MXU), f32 accumulate.
    h2 = jnp.dot(w2t_ref[...], h1.astype(w2t_ref.dtype),
                 preferred_element_type=jnp.float32)     # (d2, TN)
    h2 = jnp.maximum(h2 + w3b2_ref[:, 0:1], 0.0)         # + b2, ReLU

    # Layer 3 on VPU + sublane reduce (degenerate N=1 matmul kept off the MXU):
    out = jnp.sum(w3b2_ref[:, 1:2] * h2, axis=0, keepdims=True) + b3_ref[0, 0]
    o_ref[...] = out.astype(o_ref.dtype)


def _pick_tn(n, max_tn):
    """Lane-dense tile size: multiple of 512, capped at max_tn, grid >= 2 when possible."""
    base = 512
    n_base = -(-n // base)                       # ceil(n / 512)
    per_block = max(1, min(max_tn // base, -(-n_base // 2)))   # keep >= 2 grid steps (v7x)
    return base * per_block


@functools.partial(jax.jit, static_argnames=("use_bf16", "max_tn"))
def dumb_linear_forward(t, x, params, *, use_bf16=True, max_tn=2048):
    """t, x: (N,) float32.  params: (w1, b1, w2, b2, w3, b3) with w stored (in, out)."""
    w1, b1, w2, b2, w3, b3 = params
    n = t.shape[0]
    d1 = w1.shape[1]          # 2 * bw
    d2 = w2.shape[1]          # 4 * bw

    tn = _pick_tn(n, max_tn)
    g = pl.cdiv(n, tn)        # ragged final block handled by Pallas (masked writeback)

    t2 = t.reshape(1, n)      # free layout change; no pad / HBM round-trip
    x2 = x.reshape(1, n)

    # Kernel-friendly parameter layouts (features on sublanes, batch on lanes),
    # with width-1 columns packed to cut tiny resident blocks / DMA descriptors.
    w1b1 = jnp.concatenate([w1.T, b1.reshape(d1, 1)], axis=1)        # (d1, 3)
    w2t = w2.T                                                       # (d2, d1)
    if use_bf16:
        w2t = w2t.astype(jnp.bfloat16)    # grid-invariant: cast once on host side
    w3b2 = jnp.concatenate([b2.reshape(d2, 1), w3.reshape(d2, 1)], axis=1)  # (d2, 2)
    b3s = b3.reshape(1, 1)                                           # scalar -> SMEM

    # Explicit VMEM budget with headroom (v7x: 64 MiB physical / 32 MiB scoped default;
    # v5e: 16 MiB scoped default).
    w2_bytes = 2 if use_bf16 else 4
    est = ((d1 + d2) * tn * 4            # h1 + h2 intermediates
           + d1 * 3 * 4 + d2 * 2 * 4     # packed small params
           + d2 * d1 * w2_bytes          # resident w2
           + 3 * 2 * tn * 4)             # double-buffered t/x/out tiles
    vmem_limit = int(min(max(2 * est + (8 << 20), 16 << 20), 56 << 20))

    out = pl.pallas_call(
        mlp3l_kernel,
        out_shape=jax.ShapeDtypeStruct((1, n), jnp.float32),
        grid_spec=pltpu.PrefetchScalarGridSpec(
            num_scalar_prefetch=0,
            grid=(g,),
            in_specs=[
                pl.BlockSpec((1, tn), lambda i: (0, i)),      # t tile (lane-dense)
                pl.BlockSpec((1, tn), lambda i: (0, i)),      # x tile (lane-dense)
                pl.BlockSpec((d1, 3), lambda i: (0, 0)),      # [w1_t | w1_x | b1], resident
                pl.BlockSpec((d2, d1), lambda i: (0, 0)),     # w2^T, resident
                pl.BlockSpec((d2, 2), lambda i: (0, 0)),      # [b2 | w3], resident
                pl.BlockSpec(memory_space=pltpu.MemorySpace.SMEM),  # b3 scalar
            ],
            out_specs=pl.BlockSpec((1, tn), lambda i: (0, i)),
        ),
        compiler_params=pltpu.CompilerParams(
            dimension_semantics=("parallel",),
            vmem_limit_bytes=vmem_limit),
    )(t2, x2, w1b1, w2t, w3b2, b3s)

    return out.reshape(-1)   # squeeze_(-1)


def init_params(key, base_width=32):
    """nn.Linear-style init: U(-1/sqrt(fan_in), 1/sqrt(fan_in)); weights stored (in, out)."""
    dims = [2, 2 * base_width, 4 * base_width, 1]
    params = []
    keys = jax.random.split(key, 2 * (len(dims) - 1))
    for li in range(len(dims) - 1):
        fan_in, fan_out = dims[li], dims[li + 1]
        bound = 1.0 / jnp.sqrt(jnp.float32(fan_in))
        w = jax.random.uniform(keys[2 * li], (fan_in, fan_out),
                               minval=-bound, maxval=bound, dtype=jnp.float32)
        b = jax.random.uniform(keys[2 * li + 1], (fan_out,),
                               minval=-bound, maxval=bound, dtype=jnp.float32)
        params.extend([w, b])
    return tuple(params)


def reference_forward(t, x, params):
    w1, b1, w2, b2, w3, b3 = params
    tx = jnp.stack((t, x), axis=-1)
    h1 = jnp.maximum(tx @ w1 + b1, 0.0)
    h2 = jnp.maximum(h1 @ w2 + b2, 0.0)
    return (h2 @ w3 + b3)[:, 0]


if __name__ == "__main__":
    key = jax.random.PRNGKey(0)
    kp, kt, kx = jax.random.split(key, 3)

    base_width = 32          # small synthetic width (module default is 128)
    n = 2000                 # not a multiple of the tile -> exercises ragged final block

    params = init_params(kp, base_width=base_width)
    t = jax.random.normal(kt, (n,), dtype=jnp.float32)
    x = jax.random.normal(kx, (n,), dtype=jnp.float32)

    y_ref = reference_forward(t, x, params)

    # Exact-math path (f32 MXU): matches reference tightly.
    y_f32 = jax.block_until_ready(dumb_linear_forward(t, x, params, use_bf16=False))
    assert y_f32.shape == (n,)
    assert jnp.allclose(y_f32, y_ref, atol=1e-4, rtol=1e-4), "f32 mismatch vs reference"

    # Fast path (bf16 MXU operands, f32 accumulate): looser tolerance by design.
    y = jax.block_until_ready(dumb_linear_forward(t, x, params, use_bf16=True))
    assert y.shape == (n,)
    assert jnp.allclose(y, y_ref, atol=5e-2, rtol=5e-2), "bf16 mismatch vs reference"

    print("KERNEL_OK")
</pallas_src>

<mosaic_0001>
module attributes {stable_mosaic.version = 11 : i64} {
  func.func @mlp3l_kernel(%arg0: i32, %arg1: memref<1x1024xf32, #tpu.memory_space<vmem>>, %arg2: memref<1x1024xf32, #tpu.memory_space<vmem>>, %arg3: memref<64x3xf32, #tpu.memory_space<vmem>>, %arg4: memref<128x64xf32, #tpu.memory_space<vmem>>, %arg5: memref<128x2xf32, #tpu.memory_space<vmem>>, %arg6: memref<1x1xf32, #tpu.memory_space<smem>>, %arg7: memref<1x1024xf32, #tpu.memory_space<vmem>>) attributes {dimension_semantics = [#tpu.dimension_semantics<parallel>], iteration_bounds = array<i64: 2>, scalar_prefetch = 0 : i64, scratch_operands = 0 : i64, tpu.core_type = #tpu.core_type<tc>, window_params = [{transform_indices = @transform_0, window_bounds = array<i64: 1, 1024>}, {transform_indices = @transform_1, window_bounds = array<i64: 1, 1024>}, {pipeline_mode = #tpu.pipeline_mode<synchronous>, transform_indices = @transform_2, window_bounds = array<i64: 64, 3>}, {pipeline_mode = #tpu.pipeline_mode<synchronous>, transform_indices = @transform_3, window_bounds = array<i64: 128, 64>}, {pipeline_mode = #tpu.pipeline_mode<synchronous>, transform_indices = @transform_4, window_bounds = array<i64: 128, 2>}, {transform_indices = @transform_5, window_bounds = array<i64: 1, 1>}, {transform_indices = @transform_6, window_bounds = array<i64: 1, 1024>}]} {
    %c0 = arith.constant 0 : index
    %c0_0 = arith.constant 0 : index
    %0 = vector.load %arg1[%c0, %c0_0] : memref<1x1024xf32, #tpu.memory_space<vmem>>, vector<1x1024xf32>
    %c0_1 = arith.constant 0 : index
    %c0_2 = arith.constant 0 : index
    %1 = vector.load %arg2[%c0_1, %c0_2] : memref<1x1024xf32, #tpu.memory_space<vmem>>, vector<1x1024xf32>
    %c0_3 = arith.constant 0 : index
    %c0_4 = arith.constant 0 : index
    %2 = vector.load %arg3[%c0_3, %c0_4] : memref<64x3xf32, #tpu.memory_space<vmem>>, vector<64x1xf32>
    %3 = vector.broadcast %2 : vector<64x1xf32> to vector<64x1024xf32>
    %4 = vector.broadcast %0 : vector<1x1024xf32> to vector<64x1024xf32>
    %5 = arith.mulf %3, %4 : vector<64x1024xf32>
    %c0_5 = arith.constant 0 : index
    %c1 = arith.constant 1 : index
    %6 = vector.load %arg3[%c0_5, %c1] : memref<64x3xf32, #tpu.memory_space<vmem>>, vector<64x1xf32>
    %7 = vector.broadcast %6 : vector<64x1xf32> to vector<64x1024xf32>
    %8 = vector.broadcast %1 : vector<1x1024xf32> to vector<64x1024xf32>
    %9 = arith.mulf %7, %8 : vector<64x1024xf32>
    %10 = arith.addf %5, %9 : vector<64x1024xf32>
    %c0_6 = arith.constant 0 : index
    %c2 = arith.constant 2 : index
    %11 = vector.load %arg3[%c0_6, %c2] : memref<64x3xf32, #tpu.memory_space<vmem>>, vector<64x1xf32>
    %12 = vector.broadcast %11 : vector<64x1xf32> to vector<64x1024xf32>
    %13 = arith.addf %10, %12 : vector<64x1024xf32>
    %cst = arith.constant 0.000000e+00 : f32
    %14 = vector.broadcast %cst : f32 to vector<64x1024xf32>
    %15 = arith.maximumf %13, %14 : vector<64x1024xf32>
    %c0_7 = arith.constant 0 : index
    %c0_8 = arith.constant 0 : index
    %16 = vector.load %arg4[%c0_7, %c0_8] : memref<128x64xf32, #tpu.memory_space<vmem>>, vector<128x64xf32>
    %cst_9 = arith.constant dense<0.000000e+00> : vector<128x1024xf32>
    %17 = tpu.matmul %16, %15, %cst_9 {dimension_numbers = #tpu.dot_dimension_numbers<[1], [0], [0], [1], [0, 0, 1, 1], [], []>} : vector<128x64xf32>, vector<64x1024xf32>, vector<128x1024xf32> -> vector<128x1024xf32>
    %c0_10 = arith.constant 0 : index
    %c0_11 = arith.constant 0 : index
    %18 = vector.load %arg5[%c0_10, %c0_11] : memref<128x2xf32, #tpu.memory_space<vmem>>, vector<128x1xf32>
    %19 = vector.broadcast %18 : vector<128x1xf32> to vector<128x1024xf32>
    %20 = arith.addf %17, %19 : vector<128x1024xf32>
    %cst_12 = arith.constant 0.000000e+00 : f32
    %21 = vector.broadcast %cst_12 : f32 to vector<128x1024xf32>
    %22 = arith.maximumf %20, %21 : vector<128x1024xf32>
    %c0_13 = arith.constant 0 : index
    %c1_14 = arith.constant 1 : index
    %23 = vector.load %arg5[%c0_13, %c1_14] : memref<128x2xf32, #tpu.memory_space<vmem>>, vector<128x1xf32>
    %24 = vector.broadcast %23 : vector<128x1xf32> to vector<128x1024xf32>
    %25 = arith.mulf %24, %22 : vector<128x1024xf32>
    %cst_15 = arith.constant dense<0.000000e+00> : vector<1024xf32>
    %26 = vector.multi_reduction <add>, %25, %cst_15 [0] : vector<128x1024xf32> to vector<1024xf32>
    %27 = vector.shape_cast %26 : vector<1024xf32> to vector<1x1024xf32>
    %c0_16 = arith.constant 0 : index
    %c0_17 = arith.constant 0 : index
    %28 = memref.load %arg6[%c0_16, %c0_17] : memref<1x1xf32, #tpu.memory_space<smem>>
    %29 = vector.broadcast %28 : f32 to vector<1x1024xf32>
    %30 = arith.addf %27, %29 : vector<1x1024xf32>
    %c0_18 = arith.constant 0 : index
    %c0_19 = arith.constant 0 : index
    %31 = vector.load %arg7[%c0_18, %c0_19] : memref<1x1024xf32, #tpu.memory_space<vmem>>, vector<1x1024xf32>
    tpu.vector_store %arg7[%c0_18, %c0_19], %30 {strides = array<i32>} : memref<1x1024xf32, #tpu.memory_space<vmem>>, vector<1x1024xf32>,
    return
  }
  func.func @transform_0(%arg0: i32) -> (i32, i32) {
    %c0_i32 = arith.constant 0 : i32
    %c0_i32_0 = arith.constant 0 : i32
    return %c0_i32, %arg0 : i32, i32
  }
  func.func @transform_1(%arg0: i32) -> (i32, i32) {
    %c0_i32 = arith.constant 0 : i32
    %c0_i32_0 = arith.constant 0 : i32
    return %c0_i32, %arg0 : i32, i32
  }
  func.func @transform_2(%arg0: i32) -> (i32, i32) {
    %c0_i32 = arith.constant 0 : i32
    %c0_i32_0 = arith.constant 0 : i32
    %c0_i32_1 = arith.constant 0 : i32
    return %c0_i32, %c0_i32_0 : i32, i32
  }
  func.func @transform_3(%arg0: i32) -> (i32, i32) {
    %c0_i32 = arith.constant 0 : i32
    %c0_i32_0 = arith.constant 0 : i32
    %c0_i32_1 = arith.constant 0 : i32
    return %c0_i32, %c0_i32_0 : i32, i32
  }
  func.func @transform_4(%arg0: i32) -> (i32, i32) {
    %c0_i32 = arith.constant 0 : i32
    %c0_i32_0 = arith.constant 0 : i32
    %c0_i32_1 = arith.constant 0 : i32
    return %c0_i32, %c0_i32_0 : i32, i32
  }
  func.func @transform_5(%arg0: i32) -> (i32, i32) {
    %c0_i32 = arith.constant 0 : i32
    %c0_i32_0 = arith.constant 0 : i32
    %c0_i32_1 = arith.constant 0 : i32
    return %c0_i32, %c0_i32_0 : i32, i32
  }
  func.func @transform_6(%arg0: i32) -> (i32, i32) {
    %c0_i32 = arith.constant 0 : i32
    %c0_i32_0 = arith.constant 0 : i32
    return %c0_i32, %arg0 : i32, i32
  }
}

</mosaic_0001>

<llo_original>
// kernel: dumb_linear_forward.1
$region0: #{dumb_linear_forward.1}
  #allocation0 [shape = 'u32[]', space=smem, size = 0x4, offset = 0x4, fixed_abs, tag = 'smem constant byte address 0x4 - core index']
  #allocation1 [shape = 'u32[144,128]{1,0:T(1,128)}', space=vmem, size = 0x12000, scoped, tag = 'internal scratch']
  #allocation2 [shape = 'f32[1,1]{1,0:T(1,128)S(6)}', space=smem, size = 0x200, scoped, tag = 'scoped memory for dumb_linear_forward.1']
  %s0 = inlined_call_operand.vmem [shape: f32[1,2000], index: 0, kind: input, shape index: {}]
  %s1 = inlined_call_operand.vmem [shape: f32[1,2000], index: 1, kind: input, shape index: {}]
  %s2 = inlined_call_operand.vmem [shape: f32[64,3], index: 2, kind: input, shape index: {}]
  %s3 = inlined_call_operand.vmem [shape: f32[128,64], index: 3, kind: input, shape index: {}]
  %s4 = inlined_call_operand.vmem [shape: f32[128,2], index: 4, kind: input, shape index: {}]
  %s5 = inlined_call_operand.<no memory space> [shape: f32[1,1], index: 5, kind: input, shape index: {}]
  %s6 = inlined_call_operand.hbm [shape: f32[1,2000], index: 6, kind: output, shape index: {}]
  %s7 = sld [smem:[#allocation0]]
  $region57: #{dumb_linear_forward.1} parent=0
    _
  %s9 = ssub.s32 1, %s7
  %s10 = scalar_select 0, %s9, %s7
  %11 = sst [smem:[#allocation2]] %s5
  $region1: #{dumb_linear_forward.1} parent=0
    #allocation3 [shape = 'u8[8192]{0}', space=vmem, size = 0x2000, scoped, tag = 'output window, operand 0']
    #allocation4 [shape = 's32[2]{0}', space=sflag, size = 0x8, scoped, tag = 'scoped memory for dumb_linear_forward.1']
    %12 = vsyncpa [#allocation4], 0
    %s13 = scalar_lea.sflag [#allocation4], 1
    %14 = vsyncpa %s13, 0
    loop: start=0, step=1, limit=4
    $region2: #{dumb_linear_forward.1} parent=1 // loop_pre_header
      _
    $region3: #{dumb_linear_forward.1} parent=1 // loop_header
      %s16 = sphi 0, %s20
      %p17 = scmp.ge.s32.totalorder %s16, 4
      %s26 = sphi 0, %s28
      %s29 = sphi 0, %s26
      %s30 = sphi 0, %s29
      %s46 = sphi 0, %s30
      %s52 = sphi 0, %s54
      %s55 = sphi 0, %s52
      %s56 = sphi 0, %s55
      %s72 = sphi 0, %s56
      %s76 = sphi 0, %s76
      %s78 = sphi 0, %s76
      %s79 = sphi 0, %s78
      %s93 = sphi 0, %s79
      %s97 = sphi 0, %s97
      %s99 = sphi 0, %s97
      %s100 = sphi 0, %s99
      %s114 = sphi 0, %s100
      %s118 = sphi 0, %s118
      %s120 = sphi 0, %s118
      %s121 = sphi 0, %s120
      %s135 = sphi 0, %s121
      %s139 = sphi 0, %s139
      %s141 = sphi 0, %s139
      %s142 = sphi 0, %s141
      %s156 = sphi 0, %s142
      %s162 = sphi 0, %s164
      %s165 = sphi 0, %s162
      %s166 = sphi 0, %s165
      %s182 = sphi 0, %s166
    $region4: #{dumb_linear_forward.1} parent=1 // loop_header_branch
      %19 = sbr.rel (%p17) target = $region8
    $region5: #{dumb_linear_forward.1} parent=1 // loop_body
      %s21 = ssub.s32 %s16, 1
      %s22 = ssub.s32 %s16, 2
      %s23 = sadd.s32 %s16, 1
      %s24 = ssub.s32 %s16, %s23
      %p25 = scmp.eq.s32.totalorder %s24, 0
      %s27 = sadd.s32 %s26, 1
      %s28 = scalar_select %p25, %s26, %s27
      %p31 = pneg %p25
      %p32 = scmp.eq.s32.totalorder %s16, 1
      %p33 = por %p31, %p32
      %p34 = scmp.ne.s32.totalorder %s26, %s29
      %p35 = scmp.eq.s32.totalorder %s16, 0
      %p36 = por %p34, %p35
      %p37 = scmp.ne.s32.totalorder %s26, %s29
      %p38 = scmp.eq.s32.totalorder %s21, 1
      %p39 = por %p37, %p38
      %p40 = scmp.ne.s32.totalorder %s29, %s30
      %p41 = scmp.eq.s32.totalorder %s21, 0
      %p42 = por %p40, %p41
      %p43 = scmp.ne.s32.totalorder %s29, %s30
      %p44 = scmp.eq.s32.totalorder %s22, 1
      %p45 = por %p43, %p44
      %p47 = scmp.ne.s32.totalorder %s30, %s46
      %p48 = scmp.eq.s32.totalorder %s22, 0
      %p49 = por %p47, %p48
      %s50 = ssub.s32 %s16, %s23
      %p51 = scmp.eq.s32.totalorder %s50, 0
      %s53 = sadd.s32 %s52, 1
      %s54 = scalar_select %p51, %s52, %s53
      %p57 = pneg %p51
      %p58 = scmp.eq.s32.totalorder %s16, 1
      %p59 = por %p57, %p58
      %p60 = scmp.ne.s32.totalorder %s52, %s55
      %p61 = scmp.eq.s32.totalorder %s16, 0
      %p62 = por %p60, %p61
      %p63 = scmp.ne.s32.totalorder %s52, %s55
      %p64 = scmp.eq.s32.totalorder %s21, 1
      %p65 = por %p63, %p64
      %p66 = scmp.ne.s32.totalorder %s55, %s56
      %p67 = scmp.eq.s32.totalorder %s21, 0
      %p68 = por %p66, %p67
      %p69 = scmp.ne.s32.totalorder %s55, %s56
      %p70 = scmp.eq.s32.totalorder %s22, 1
      %p71 = por %p69, %p70
      %p73 = scmp.ne.s32.totalorder %s56, %s72
      %p74 = scmp.eq.s32.totalorder %s22, 0
      %p75 = por %p73, %p74
      %s77 = sadd.s32 %s76, 1
      %p80 = scmp.eq.s32.totalorder %s16, 1
      %p81 = scmp.ne.s32.totalorder %s76, %s78
      %p82 = scmp.eq.s32.totalorder %s16, 0
      %p83 = por %p81, %p82
      %p84 = scmp.ne.s32.totalorder %s76, %s78
      %p85 = scmp.eq.s32.totalorder %s21, 1
      %p86 = por %p84, %p85
      %p87 = scmp.ne.s32.totalorder %s78, %s79
      %p88 = scmp.eq.s32.totalorder %s21, 0
      %p89 = por %p87, %p88
      %p90 = scmp.ne.s32.totalorder %s78, %s79
      %p91 = scmp.eq.s32.totalorder %s22, 1
      %p92 = por %p90, %p91
      %p94 = scmp.ne.s32.totalorder %s79, %s93
      %p95 = scmp.eq.s32.totalorder %s22, 0
      %p96 = por %p94, %p95
      %s98 = sadd.s32 %s97, 1
      %p101 = scmp.eq.s32.totalorder %s16, 1
      %p102 = scmp.ne.s32.totalorder %s97, %s99
      %p103 = scmp.eq.s32.totalorder %s16, 0
      %p104 = por %p102, %p103
      %p105 = scmp.ne.s32.totalorder %s97, %s99
      %p106 = scmp.eq.s32.totalorder %s21, 1
      %p107 = por %p105, %p106
      %p108 = scmp.ne.s32.totalorder %s99, %s100
      %p109 = scmp.eq.s32.totalorder %s21, 0
      %p110 = por %p108, %p109
      %p111 = scmp.ne.s32.totalorder %s99, %s100
      %p112 = scmp.eq.s32.totalorder %s22, 1
      %p113 = por %p111, %p112
      %p115 = scmp.ne.s32.totalorder %s100, %s114
      %p116 = scmp.eq.s32.totalorder %s22, 0
      %p117 = por %p115, %p116
      %s119 = sadd.s32 %s118, 1
      %p122 = scmp.eq.s32.totalorder %s16, 1
      %p123 = scmp.ne.s32.totalorder %s118, %s120
      %p124 = scmp.eq.s32.totalorder %s16, 0
      %p125 = por %p123, %p124
      %p126 = scmp.ne.s32.totalorder %s118, %s120
      %p127 = scmp.eq.s32.totalorder %s21, 1
      %p128 = por %p126, %p127
      %p129 = scmp.ne.s32.totalorder %s120, %s121
      %p130 = scmp.eq.s32.totalorder %s21, 0
      %p131 = por %p129, %p130
      %p132 = scmp.ne.s32.totalorder %s120, %s121
      %p133 = scmp.eq.s32.totalorder %s22, 1
      %p134 = por %p132, %p133
      %p136 = scmp.ne.s32.totalorder %s121, %s135
      %p137 = scmp.eq.s32.totalorder %s22, 0
      %p138 = por %p136, %p137
      %s140 = sadd.s32 %s139, 1
      %p143 = scmp.eq.s32.totalorder %s16, 1
      %p144 = scmp.ne.s32.totalorder %s139, %s141
      %p145 = scmp.eq.s32.totalorder %s16, 0
      %p146 = por %p144, %p145
      %p147 = scmp.ne.s32.totalorder %s139, %s141
      %p148 = scmp.eq.s32.totalorder %s21, 1
      %p149 = por %p147, %p148
      %p150 = scmp.ne.s32.totalorder %s141, %s142
      %p151 = scmp.eq.s32.totalorder %s21, 0
      %p152 = por %p150, %p151
      %p153 = scmp.ne.s32.totalorder %s141, %s142
      %p154 = scmp.eq.s32.totalorder %s22, 1
      %p155 = por %p153, %p154
      %p157 = scmp.ne.s32.totalorder %s142, %s156
      %p158 = scmp.eq.s32.totalorder %s22, 0
      %p159 = por %p157, %p158
      %s160 = ssub.s32 %s16, %s23
      %p161 = scmp.eq.s32.totalorder %s160, 0
      %s163 = sadd.s32 %s162, 1
      %s164 = scalar_select %p161, %s162, %s163
      %p167 = pneg %p161
      %p168 = scmp.eq.s32.totalorder %s16, 1
      %p169 = por %p167, %p168
      %p170 = scmp.ne.s32.totalorder %s162, %s165
      %p171 = scmp.eq.s32.totalorder %s16, 0
      %p172 = por %p170, %p171
      %p173 = scmp.ne.s32.totalorder %s162, %s165
      %p174 = scmp.eq.s32.totalorder %s21, 1
      %p175 = por %p173, %p174
      %p176 = scmp.ne.s32.totalorder %s165, %s166
      %p177 = scmp.eq.s32.totalorder %s21, 0
      %p178 = por %p176, %p177
      %p179 = scmp.ne.s32.totalorder %s165, %s166
      %p180 = scmp.eq.s32.totalorder %s22, 1
      %p181 = por %p179, %p180
      %p183 = scmp.ne.s32.totalorder %s166, %s182
      %p184 = scmp.eq.s32.totalorder %s22, 0
      %p185 = por %p183, %p184
      %p186 = scmp.le.s32.totalorder 1, %s16
      %p187 = scmp.lt.s32.totalorder %s16, 3
      %p188 = pnand %p186, %p187
      %p189 = pneg %p188
      // Predicated region
      $region9: #{dumb_linear_forward.1} parent=5 // pred_check
        _
      $region10: #{dumb_linear_forward.1} parent=5 // pred_check_branch
        %191 = sbr.rel (%p188) target = $region12
      $region11: #{dumb_linear_forward.1} parent=5 // pred_region
        %s192 = ssub.s32 %s16, 1
        // Predicated region
        $region13: #{dumb_linear_forward.1} parent=11 // pred_check
          %p193 = pneg %p89
        $region14: #{dumb_linear_forward.1} parent=11 // pred_check_branch
          %195 = sbr.rel (%p193) target = $region16
        $region15: #{dumb_linear_forward.1} parent=11 // pred_region
          _
        $region16: #{dumb_linear_forward.1} parent=11 // pred_fallthru
          _
        // Predicated region
        $region17: #{dumb_linear_forward.1} parent=11 // pred_check
          %p196 = pneg %p110
        $region18: #{dumb_linear_forward.1} parent=11 // pred_check_branch
          %198 = sbr.rel (%p196) target = $region20
        $region19: #{dumb_linear_forward.1} parent=11 // pred_region
          _
        $region20: #{dumb_linear_forward.1} parent=11 // pred_fallthru
          _
        // Predicated region
        $region21: #{dumb_linear_forward.1} parent=11 // pred_check
          %p199 = pneg %p131
        $region22: #{dumb_linear_forward.1} parent=11 // pred_check_branch
          %201 = sbr.rel (%p199) target = $region24
        $region23: #{dumb_linear_forward.1} parent=11 // pred_region
          _
        $region24: #{dumb_linear_forward.1} parent=11 // pred_fallthru
          _
        // Predicated region
        $region25: #{dumb_linear_forward.1} parent=11 // pred_check
          %p202 = pneg %p152
        $region26: #{dumb_linear_forward.1} parent=11 // pred_check_branch
          %204 = sbr.rel (%p202) target = $region28
        $region27: #{dumb_linear_forward.1} parent=11 // pred_region
          _
        $region28: #{dumb_linear_forward.1} parent=11 // pred_fallthru
          _
      $region12: #{dumb_linear_forward.1} parent=5 // pred_fallthru
        _
      %p205 = scmp.lt.s32.totalorder %s16, 2
      // Predicated region
      $region29: #{dumb_linear_forward.1} parent=5 // pred_check
        %p206 = pneg %p205
      $region30: #{dumb_linear_forward.1} parent=5 // pred_check_branch
        %208 = sbr.rel (%p206) target = $region32
      $region31: #{dumb_linear_forward.1} parent=5 // pred_region
        // Predicated region
        $region33: #{dumb_linear_forward.1} parent=31 // pred_check
          %p209 = pneg %p36
        $region34: #{dumb_linear_forward.1} parent=31 // pred_check_branch
          %211 = sbr.rel (%p209) target = $region36
        $region35: #{dumb_linear_forward.1} parent=31 // pred_region
          %s212 = smul.u32 8, %s16
          %p213 = scmp.lt.s32.totalorder %s212, 15
          %s214 = scalar_select %p213, %s212, 15
          %s215 = scalar_lea.vmem %s0, %s214
          %s216 = smul.u32 8, %s16
        $region36: #{dumb_linear_forward.1} parent=31 // pred_fallthru
          _
        // Predicated region
        $region37: #{dumb_linear_forward.1} parent=31 // pred_check
          %p217 = pneg %p62
        $region38: #{dumb_linear_forward.1} parent=31 // pred_check_branch
          %219 = sbr.rel (%p217) target = $region40
        $region39: #{dumb_linear_forward.1} parent=31 // pred_region
          %s220 = smul.u32 8, %s16
          %p221 = scmp.lt.s32.totalorder %s220, 15
          %s222 = scalar_select %p221, %s220, 15
          %s223 = scalar_lea.vmem %s1, %s222
          %s224 = smul.u32 8, %s16
        $region40: #{dumb_linear_forward.1} parent=31 // pred_fallthru
          _
      $region32: #{dumb_linear_forward.1} parent=5 // pred_fallthru
        _
      %p225 = scmp.le.s32.totalorder 1, %s16
      %p226 = scmp.lt.s32.totalorder %s16, 3
      %p227 = pnand %p225, %p226
      %p228 = pneg %p227
      // Predicated region
      $region41: #{dumb_linear_forward.1} parent=5 // pred_check
        _
      $region42: #{dumb_linear_forward.1} parent=5 // pred_check_branch
        %230 = sbr.rel (%p227) target = $region44
      $region43: #{dumb_linear_forward.1} parent=5 // pred_region
        %s231 = ssub.s32 %s16, 1
        %s232 = smul.u32 8, %s21
        %p233 = scmp.lt.s32.totalorder %s232, 15
        %s234 = scalar_select %p233, %s232, 15
        %s235 = scalar_lea.vmem %s0, %s234
        %p236 = pneg %p42
        %p237 = pneg %p39
        %s238 = smul.u32 8, %s21
        %p239 = scmp.lt.s32.totalorder %s238, 15
        %s240 = scalar_select %p239, %s238, 15
        %s241 = scalar_lea.vmem %s1, %s240
        %p242 = pneg %p68
        %p243 = pneg %p65
        %p244 = pneg %p89
        %p245 = pneg %p86
        %p246 = pneg %p110
        %p247 = pneg %p107
        %p248 = pneg %p131
        %p249 = pneg %p128
        %p250 = pneg %p152
        %p251 = pneg %p149
        %p252 = pneg %p178
        %p253 = pneg %p175
        %s254 = sand.u32 %s165, 1
        %s255 = scalar_lea.sflag [#allocation4], %s254
        %s256 = sand.u32 %s165, 1
        %s257 = smul.addr %s256, 8
        %s258 = scalar_lea.vmem [#allocation3], %s257
        %s259 = smul.u32 8, %s21
        %p260 = scmp.lt.s32.totalorder %s259, 15
        %s261 = scalar_select %p260, %s259, 15
        %s262 = scalar_lea.vmem %s0, %s261
        %s263 = smul.u32 8, %s21
        %s264 = smul.u32 8, %s21
        %p265 = scmp.lt.s32.totalorder %s264, 15
        %s266 = scalar_select %p265, %s264, 15
        %s267 = scalar_lea.vmem %s1, %s266
        %s268 = smul.u32 8, %s21
        %s269 = smul.u32 8, %s21
        %v270 = vld [vmem:[%s262] sm:$0xff]
        %v271 = vld [vmem:[%s267] sm:$0xff]
        %v272 = vld [vmem:[%s2] sm:$0xff]
        %v273 = vld [vmem:[%s2 + $0x8] sm:$0xff]
        %v274 = vld [vmem:[%s2 + $0x10] sm:$0xff]
        %v275 = vld [vmem:[%s2 + $0x18] sm:$0xff]
        %v276 = vld [vmem:[%s2 + $0x20] sm:$0xff]
        %v277 = vld [vmem:[%s2 + $0x28] sm:$0xff]
        %v278 = vld [vmem:[%s2 + $0x30] sm:$0xff]
        %v279 = vld [vmem:[%s2 + $0x38] sm:$0xff]
        %281 = vset.pattern.permute.xlu0 0
        %282 = vperm.xlu0 %281, %v272
        %v283 = vpop.permute.xlu0 %282
        %286 = vset.pattern.permute.xlu0 0
        %287 = vperm.xlu0 %286, %v273
        %v288 = vpop.permute.xlu0 %287
        %291 = vset.pattern.permute.xlu0 0
        %292 = vperm.xlu0 %291, %v274
        %v293 = vpop.permute.xlu0 %292
        %296 = vset.pattern.permute.xlu0 0
        %297 = vperm.xlu0 %296, %v275
        %v298 = vpop.permute.xlu0 %297
        %301 = vset.pattern.permute.xlu0 0
        %302 = vperm.xlu0 %301, %v276
        %v303 = vpop.permute.xlu0 %302
        %306 = vset.pattern.permute.xlu0 0
        %307 = vperm.xlu0 %306, %v277
        %v308 = vpop.permute.xlu0 %307
        %311 = vset.pattern.permute.xlu0 0
        %312 = vperm.xlu0 %311, %v278
        %v313 = vpop.permute.xlu0 %312
        %316 = vset.pattern.permute.xlu0 0
        %317 = vperm.xlu0 %316, %v279
        %v318 = vpop.permute.xlu0 %317
        %v321 = vlaneseq
        %v322 = vshrl.u32 %v321, 7
        %v323 = vsub.s32 0, %v322
        %v324 = vrot.slane %v270, %v323
        %v325 = vlaneseq
        %v326 = vshrl.u32 %v325, 7
        %v327 = vsub.s32 1, %v326
        %v328 = vrot.slane %v270, %v327
        %v329 = vlaneseq
        %v330 = vshrl.u32 %v329, 7
        %v331 = vsub.s32 2, %v330
        %v332 = vrot.slane %v270, %v331
        %v333 = vlaneseq
        %v334 = vshrl.u32 %v333, 7
        %v335 = vsub.s32 3, %v334
        %v336 = vrot.slane %v270, %v335
        %v337 = vlaneseq
        %v338 = vshrl.u32 %v337, 7
        %v339 = vsub.s32 4, %v338
        %v340 = vrot.slane %v270, %v339
        %v341 = vlaneseq
        %v342 = vshrl.u32 %v341, 7
        %v343 = vsub.s32 5, %v342
        %v344 = vrot.slane %v270, %v343
        %v345 = vlaneseq
        %v346 = vshrl.u32 %v345, 7
        %v347 = vsub.s32 6, %v346
        %v348 = vrot.slane %v270, %v347
        %v349 = vlaneseq
        %v350 = vshrl.u32 %v349, 7
        %v351 = vsub.s32 7, %v350
        %v352 = vrot.slane %v270, %v351
        %v361 = vmul.f32 %v283, %v324
        %v362 = vmul.f32 %v283, %v328
        %v363 = vmul.f32 %v283, %v332
        %v364 = vmul.f32 %v283, %v336
        %v365 = vmul.f32 %v283, %v340
        %v366 = vmul.f32 %v283, %v344
        %v367 = vmul.f32 %v283, %v348
        %v368 = vmul.f32 %v283, %v352
        %v369 = vmul.f32 %v288, %v324
        %v370 = vmul.f32 %v288, %v328
        %v371 = vmul.f32 %v288, %v332
        %v372 = vmul.f32 %v288, %v336
        %v373 = vmul.f32 %v288, %v340
        %v374 = vmul.f32 %v288, %v344
        %v375 = vmul.f32 %v288, %v348
        %v376 = vmul.f32 %v288, %v352
        %v377 = vmul.f32 %v293, %v324
        %v378 = vmul.f32 %v293, %v328
        %v379 = vmul.f32 %v293, %v332
        %v380 = vmul.f32 %v293, %v336
        %v381 = vmul.f32 %v293, %v340
        %v382 = vmul.f32 %v293, %v344
        %v383 = vmul.f32 %v293, %v348
        %v384 = vmul.f32 %v293, %v352
        %v385 = vmul.f32 %v298, %v324
        %v386 = vmul.f32 %v298, %v328
        %v387 = vmul.f32 %v298, %v332
        %v388 = vmul.f32 %v298, %v336
        %v389 = vmul.f32 %v298, %v340
        %v390 = vmul.f32 %v298, %v344
        %v391 = vmul.f32 %v298, %v348
        %v392 = vmul.f32 %v298, %v352
        %v393 = vmul.f32 %v303, %v324
        %v394 = vmul.f32 %v303, %v328
        %v395 = vmul.f32 %v303, %v332
        %v396 = vmul.f32 %v303, %v336
        %v397 = vmul.f32 %v303, %v340
        %v398 = vmul.f32 %v303, %v344
        %v399 = vmul.f32 %v303, %v348
        %v400 = vmul.f32 %v303, %v352
        %v401 = vmul.f32 %v308, %v324
        %v402 = vmul.f32 %v308, %v328
        %v403 = vmul.f32 %v308, %v332
        %v404 = vmul.f32 %v308, %v336
        %v405 = vmul.f32 %v308, %v340
        %v406 = vmul.f32 %v308, %v344
        %v407 = vmul.f32 %v308, %v348
        %v408 = vmul.f32 %v308, %v352
        %v409 = vmul.f32 %v313, %v324
        %v410 = vmul.f32 %v313, %v328
        %v411 = vmul.f32 %v313, %v332
        %v412 = vmul.f32 %v313, %v336
        %v413 = vmul.f32 %v313, %v340
        %v414 = vmul.f32 %v313, %v344
        %v415 = vmul.f32 %v313, %v348
        %v416 = vmul.f32 %v313, %v352
        %v417 = vmul.f32 %v318, %v324
        %v418 = vmul.f32 %v318, %v328
        %v419 = vmul.f32 %v318, %v332
        %v420 = vmul.f32 %v318, %v336
        %v421 = vmul.f32 %v318, %v340
        %v422 = vmul.f32 %v318, %v344
        %v423 = vmul.f32 %v318, %v348
        %v424 = vmul.f32 %v318, %v352
        %425 = vset.pattern.permute.xlu0 1
        %426 = vperm.xlu0 %425, %v272
        %v427 = vpop.permute.xlu0 %426
        %429 = vset.pattern.permute.xlu0 1
        %430 = vperm.xlu0 %429, %v273
        %v431 = vpop.permute.xlu0 %430
        %433 = vset.pattern.permute.xlu0 1
        %434 = vperm.xlu0 %433, %v274
        %v435 = vpop.permute.xlu0 %434
        %437 = vset.pattern.permute.xlu0 1
        %438 = vperm.xlu0 %437, %v275
        %v439 = vpop.permute.xlu0 %438
        %441 = vset.pattern.permute.xlu0 1
        %442 = vperm.xlu0 %441, %v276
        %v443 = vpop.permute.xlu0 %442
        %445 = vset.pattern.permute.xlu0 1
        %446 = vperm.xlu0 %445, %v277
        %v447 = vpop.permute.xlu0 %446
        %449 = vset.pattern.permute.xlu0 1
        %450 = vperm.xlu0 %449, %v278
        %v451 = vpop.permute.xlu0 %450
        %453 = vset.pattern.permute.xlu0 1
        %454 = vperm.xlu0 %453, %v279
        %v455 = vpop.permute.xlu0 %454
        %v458 = vlaneseq
        %v459 = vshrl.u32 %v458, 7
        %v460 = vsub.s32 0, %v459
        %v461 = vrot.slane %v271, %v460
        %v462 = vlaneseq
        %v463 = vshrl.u32 %v462, 7
        %v464 = vsub.s32 1, %v463
        %v465 = vrot.slane %v271, %v464
        %v466 = vlaneseq
        %v467 = vshrl.u32 %v466, 7
        %v468 = vsub.s32 2, %v467
        %v469 = vrot.slane %v271, %v468
        %v470 = vlaneseq
        %v471 = vshrl.u32 %v470, 7
        %v472 = vsub.s32 3, %v471
        %v473 = vrot.slane %v271, %v472
        %v474 = vlaneseq
        %v475 = vshrl.u32 %v474, 7
        %v476 = vsub.s32 4, %v475
        %v477 = vrot.slane %v271, %v476
        %v478 = vlaneseq
        %v479 = vshrl.u32 %v478, 7
        %v480 = vsub.s32 5, %v479
        %v481 = vrot.slane %v271, %v480
        %v482 = vlaneseq
        %v483 = vshrl.u32 %v482, 7
        %v484 = vsub.s32 6, %v483
        %v485 = vrot.slane %v271, %v484
        %v486 = vlaneseq
        %v487 = vshrl.u32 %v486, 7
        %v488 = vsub.s32 7, %v487
        %v489 = vrot.slane %v271, %v488
        %v498 = vmul.f32 %v427, %v461
        %v499 = vmul.f32 %v427, %v465
        %v500 = vmul.f32 %v427, %v469
        %v501 = vmul.f32 %v427, %v473
        %v502 = vmul.f32 %v427, %v477
        %v503 = vmul.f32 %v427, %v481
        %v504 = vmul.f32 %v427, %v485
        %v505 = vmul.f32 %v427, %v489
        %v506 = vmul.f32 %v431, %v461
        %v507 = vmul.f32 %v431, %v465
        %v508 = vmul.f32 %v431, %v469
        %v509 = vmul.f32 %v431, %v473
        %v510 = vmul.f32 %v431, %v477
        %v511 = vmul.f32 %v431, %v481
        %v512 = vmul.f32 %v431, %v485
        %v513 = vmul.f32 %v431, %v489
        %v514 = vmul.f32 %v435, %v461
        %v515 = vmul.f32 %v435, %v465
        %v516 = vmul.f32 %v435, %v469
        %v517 = vmul.f32 %v435, %v473
        %v518 = vmul.f32 %v435, %v477
        %v519 = vmul.f32 %v435, %v481
        %v520 = vmul.f32 %v435, %v485
        %v521 = vmul.f32 %v435, %v489
        %v522 = vmul.f32 %v439, %v461
        %v523 = vmul.f32 %v439, %v465
        %v524 = vmul.f32 %v439, %v469
        %v525 = vmul.f32 %v439, %v473
        %v526 = vmul.f32 %v439, %v477
        %v527 = vmul.f32 %v439, %v481
        %v528 = vmul.f32 %v439, %v485
        %v529 = vmul.f32 %v439, %v489
        %v530 = vmul.f32 %v443, %v461
        %v531 = vmul.f32 %v443, %v465
        %v532 = vmul.f32 %v443, %v469
        %v533 = vmul.f32 %v443, %v473
        %v534 = vmul.f32 %v443, %v477
        %v535 = vmul.f32 %v443, %v481
        %v536 = vmul.f32 %v443, %v485
        %v537 = vmul.f32 %v443, %v489
        %v538 = vmul.f32 %v447, %v461
        %v539 = vmul.f32 %v447, %v465
        %v540 = vmul.f32 %v447, %v469
        %v541 = vmul.f32 %v447, %v473
        %v542 = vmul.f32 %v447, %v477
        %v543 = vmul.f32 %v447, %v481
        %v544 = vmul.f32 %v447, %v485
        %v545 = vmul.f32 %v447, %v489
        %v546 = vmul.f32 %v451, %v461
        %v547 = vmul.f32 %v451, %v465
        %v548 = vmul.f32 %v451, %v469
        %v549 = vmul.f32 %v451, %v473
        %v550 = vmul.f32 %v451, %v477
        %v551 = vmul.f32 %v451, %v481
        %v552 = vmul.f32 %v451, %v485
        %v553 = vmul.f32 %v451, %v489
        %v554 = vmul.f32 %v455, %v461
        %v555 = vmul.f32 %v455, %v465
        %v556 = vmul.f32 %v455, %v469
        %v557 = vmul.f32 %v455, %v473
        %v558 = vmul.f32 %v455, %v477
        %v559 = vmul.f32 %v455, %v481
        %v560 = vmul.f32 %v455, %v485
        %v561 = vmul.f32 %v455, %v489
        %v562 = vadd.f32 %v361, %v498
        %v563 = vadd.f32 %v362, %v499
        %v564 = vadd.f32 %v363, %v500
        %v565 = vadd.f32 %v364, %v501
        %v566 = vadd.f32 %v365, %v502
        %v567 = vadd.f32 %v366, %v503
        %v568 = vadd.f32 %v367, %v504
        %v569 = vadd.f32 %v368, %v505
        %v570 = vadd.f32 %v369, %v506
        %v571 = vadd.f32 %v370, %v507
        %v572 = vadd.f32 %v371, %v508
        %v573 = vadd.f32 %v372, %v509
        %v574 = vadd.f32 %v373, %v510
        %v575 = vadd.f32 %v374, %v511
        %v576 = vadd.f32 %v375, %v512
        %v577 = vadd.f32 %v376, %v513
        %v578 = vadd.f32 %v377, %v514
        %v579 = vadd.f32 %v378, %v515
        %v580 = vadd.f32 %v379, %v516
        %v581 = vadd.f32 %v380, %v517
        %v582 = vadd.f32 %v381, %v518
        %v583 = vadd.f32 %v382, %v519
        %v584 = vadd.f32 %v383, %v520
        %v585 = vadd.f32 %v384, %v521
        %v586 = vadd.f32 %v385, %v522
        %v587 = vadd.f32 %v386, %v523
        %v588 = vadd.f32 %v387, %v524
        %v589 = vadd.f32 %v388, %v525
        %v590 = vadd.f32 %v389, %v526
        %v591 = vadd.f32 %v390, %v527
        %v592 = vadd.f32 %v391, %v528
        %v593 = vadd.f32 %v392, %v529
        %v594 = vadd.f32 %v393, %v530
        %v595 = vadd.f32 %v394, %v531
        %v596 = vadd.f32 %v395, %v532
        %v597 = vadd.f32 %v396, %v533
        %v598 = vadd.f32 %v397, %v534
        %v599 = vadd.f32 %v398, %v535
        %v600 = vadd.f32 %v399, %v536
        %v601 = vadd.f32 %v400, %v537
        %v602 = vadd.f32 %v401, %v538
        %v603 = vadd.f32 %v402, %v539
        %v604 = vadd.f32 %v403, %v540
        %v605 = vadd.f32 %v404, %v541
        %v606 = vadd.f32 %v405, %v542
        %v607 = vadd.f32 %v406, %v543
        %v608 = vadd.f32 %v407, %v544
        %v609 = vadd.f32 %v408, %v545
        %v610 = vadd.f32 %v409, %v546
        %v611 = vadd.f32 %v410, %v547
        %v612 = vadd.f32 %v411, %v548
        %v613 = vadd.f32 %v412, %v549
        %v614 = vadd.f32 %v413, %v550
        %v615 = vadd.f32 %v414, %v551
        %v616 = vadd.f32 %v415, %v552
        %v617 = vadd.f32 %v416, %v553
        %v618 = vadd.f32 %v417, %v554
        %v619 = vadd.f32 %v418, %v555
        %v620 = vadd.f32 %v419, %v556
        %v621 = vadd.f32 %v420, %v557
        %v622 = vadd.f32 %v421, %v558
        %v623 = vadd.f32 %v422, %v559
        %v624 = vadd.f32 %v423, %v560
        %v625 = vadd.f32 %v424, %v561
        %626 = vset.pattern.permute.xlu0 2
        %627 = vperm.xlu0 %626, %v272
        %v628 = vpop.permute.xlu0 %627
        %630 = vset.pattern.permute.xlu0 2
        %631 = vperm.xlu0 %630, %v273
        %v632 = vpop.permute.xlu0 %631
        %634 = vset.pattern.permute.xlu0 2
        %635 = vperm.xlu0 %634, %v274
        %v636 = vpop.permute.xlu0 %635
        %638 = vset.pattern.permute.xlu0 2
        %639 = vperm.xlu0 %638, %v275
        %v640 = vpop.permute.xlu0 %639
        %642 = vset.pattern.permute.xlu0 2
        %643 = vperm.xlu0 %642, %v276
        %v644 = vpop.permute.xlu0 %643
        %646 = vset.pattern.permute.xlu0 2
        %647 = vperm.xlu0 %646, %v277
        %v648 = vpop.permute.xlu0 %647
        %650 = vset.pattern.permute.xlu0 2
        %651 = vperm.xlu0 %650, %v278
        %v652 = vpop.permute.xlu0 %651
        %654 = vset.pattern.permute.xlu0 2
        %655 = vperm.xlu0 %654, %v279
        %v656 = vpop.permute.xlu0 %655
        %v658 = vadd.f32 %v562, %v628
        %v659 = vadd.f32 %v563, %v628
        %v660 = vadd.f32 %v564, %v628
        %v661 = vadd.f32 %v565, %v628
        %v662 = vadd.f32 %v566, %v628
        %v663 = vadd.f32 %v567, %v628
        %v664 = vadd.f32 %v568, %v628
        %v665 = vadd.f32 %v569, %v628
        %v666 = vadd.f32 %v570, %v632
        %v667 = vadd.f32 %v571, %v632
        %v668 = vadd.f32 %v572, %v632
        %v669 = vadd.f32 %v573, %v632
        %v670 = vadd.f32 %v574, %v632
        %v671 = vadd.f32 %v575, %v632
        %v672 = vadd.f32 %v576, %v632
        %v673 = vadd.f32 %v577, %v632
        %v674 = vadd.f32 %v578, %v636
        %v675 = vadd.f32 %v579, %v636
        %v676 = vadd.f32 %v580, %v636
        %v677 = vadd.f32 %v581, %v636
        %v678 = vadd.f32 %v582, %v636
        %v679 = vadd.f32 %v583, %v636
        %v680 = vadd.f32 %v584, %v636
        %v681 = vadd.f32 %v585, %v636
        %v682 = vadd.f32 %v586, %v640
        %v683 = vadd.f32 %v587, %v640
        %v684 = vadd.f32 %v588, %v640
        %v685 = vadd.f32 %v589, %v640
        %v686 = vadd.f32 %v590, %v640
        %v687 = vadd.f32 %v591, %v640
        %v688 = vadd.f32 %v592, %v640
        %v689 = vadd.f32 %v593, %v640
        %v690 = vadd.f32 %v594, %v644
        %v691 = vadd.f32 %v595, %v644
        %v692 = vadd.f32 %v596, %v644
        %v693 = vadd.f32 %v597, %v644
        %v694 = vadd.f32 %v598, %v644
        %v695 = vadd.f32 %v599, %v644
        %v696 = vadd.f32 %v600, %v644
        %v697 = vadd.f32 %v601, %v644
        %v698 = vadd.f32 %v602, %v648
        %v699 = vadd.f32 %v603, %v648
        %v700 = vadd.f32 %v604, %v648
        %v701 = vadd.f32 %v605, %v648
        %v702 = vadd.f32 %v606, %v648
        %v703 = vadd.f32 %v607, %v648
        %v704 = vadd.f32 %v608, %v648
        %v705 = vadd.f32 %v609, %v648
        %v706 = vadd.f32 %v610, %v652
        %v707 = vadd.f32 %v611, %v652
        %v708 = vadd.f32 %v612, %v652
        %v709 = vadd.f32 %v613, %v652
        %v710 = vadd.f32 %v614, %v652
        %v711 = vadd.f32 %v615, %v652
        %v712 = vadd.f32 %v616, %v652
        %v713 = vadd.f32 %v617, %v652
        %v714 = vadd.f32 %v618, %v656
        %v715 = vadd.f32 %v619, %v656
        %v716 = vadd.f32 %v620, %v656
        %v717 = vadd.f32 %v621, %v656
        %v718 = vadd.f32 %v622, %v656
        %v719 = vadd.f32 %v623, %v656
        %v720 = vadd.f32 %v624, %v656
        %v721 = vadd.f32 %v625, %v656
        %v722 = vmax.f32 %v658, 0.0
        %v723 = vmax.f32 %v659, 0.0
        %v724 = vmax.f32 %v660, 0.0
        %v725 = vmax.f32 %v661, 0.0
        %v726 = vmax.f32 %v662, 0.0
        %v727 = vmax.f32 %v663, 0.0
        %v728 = vmax.f32 %v664, 0.0
        %v729 = vmax.f32 %v665, 0.0
        %v730 = vmax.f32 %v666, 0.0
        %v731 = vmax.f32 %v667, 0.0
        %v732 = vmax.f32 %v668, 0.0
        %v733 = vmax.f32 %v669, 0.0
        %v734 = vmax.f32 %v670, 0.0
        %v735 = vmax.f32 %v671, 0.0
        %v736 = vmax.f32 %v672, 0.0
        %v737 = vmax.f32 %v673, 0.0
        %v738 = vmax.f32 %v674, 0.0
        %v739 = vmax.f32 %v675, 0.0
        %v740 = vmax.f32 %v676, 0.0
        %v741 = vmax.f32 %v677, 0.0
        %v742 = vmax.f32 %v678, 0.0
        %v743 = vmax.f32 %v679, 0.0
        %v744 = vmax.f32 %v680, 0.0
        %v745 = vmax.f32 %v681, 0.0
        %v746 = vmax.f32 %v682, 0.0
        %v747 = vmax.f32 %v683, 0.0
        %v748 = vmax.f32 %v684, 0.0
        %v749 = vmax.f32 %v685, 0.0
        %v750 = vmax.f32 %v686, 0.0
        %v751 = vmax.f32 %v687, 0.0
        %v752 = vmax.f32 %v688, 0.0
        %v753 = vmax.f32 %v689, 0.0
        %v754 = vmax.f32 %v690, 0.0
        %v755 = vmax.f32 %v691, 0.0
        %v756 = vmax.f32 %v692, 0.0
        %v757 = vmax.f32 %v693, 0.0
        %v758 = vmax.f32 %v694, 0.0
        %v759 = vmax.f32 %v695, 0.0
        %v760 = vmax.f32 %v696, 0.0
        %v761 = vmax.f32 %v697, 0.0
        %v762 = vmax.f32 %v698, 0.0
        %v763 = vmax.f32 %v699, 0.0
        %v764 = vmax.f32 %v700, 0.0
        %v765 = vmax.f32 %v701, 0.0
        %v766 = vmax.f32 %v702, 0.0
        %v767 = vmax.f32 %v703, 0.0
        %v768 = vmax.f32 %v704, 0.0
        %v769 = vmax.f32 %v705, 0.0
        %v770 = vmax.f32 %v706, 0.0
        %v771 = vmax.f32 %v707, 0.0
        %v772 = vmax.f32 %v708, 0.0
        %v773 = vmax.f32 %v709, 0.0
        %v774 = vmax.f32 %v710, 0.0
        %v775 = vmax.f32 %v711, 0.0
        %v776 = vmax.f32 %v712, 0.0
        %v777 = vmax.f32 %v713, 0.0
        %v778 = vmax.f32 %v714, 0.0
        %v779 = vmax.f32 %v715, 0.0
        %v780 = vmax.f32 %v716, 0.0
        %v781 = vmax.f32 %v717, 0.0
        %v782 = vmax.f32 %v718, 0.0
        %v783 = vmax.f32 %v719, 0.0
        %v784 = vmax.f32 %v720, 0.0
        %v785 = vmax.f32 %v721, 0.0
        %v786 = vld [vmem:[%s3] sm:$0xff]
        %v787 = vld [vmem:[%s3 + $0x8] sm:$0xff]
        %v788 = vld [vmem:[%s3 + $0x10] sm:$0xff]
        %v789 = vld [vmem:[%s3 + $0x18] sm:$0xff]
        %v790 = vld [vmem:[%s3 + $0x20] sm:$0xff]
        %v791 = vld [vmem:[%s3 + $0x28] sm:$0xff]
        %v792 = vld [vmem:[%s3 + $0x30] sm:$0xff]
        %v793 = vld [vmem:[%s3 + $0x38] sm:$0xff]
        %v794 = vld [vmem:[%s3 + $0x40] sm:$0xff]
        %v795 = vld [vmem:[%s3 + $0x48] sm:$0xff]
        %v796 = vld [vmem:[%s3 + $0x50] sm:$0xff]
        %v797 = vld [vmem:[%s3 + $0x58] sm:$0xff]
        %v798 = vld [vmem:[%s3 + $0x60] sm:$0xff]
        %v799 = vld [vmem:[%s3 + $0x68] sm:$0xff]
        %v800 = vld [vmem:[%s3 + $0x70] sm:$0xff]
        %v801 = vld [vmem:[%s3 + $0x78] sm:$0xff]
        %v802 = vld [vmem:[%s4] sm:$0xff]
        %v803 = vld [vmem:[%s4 + $0x8] sm:$0xff]
        %v804 = vld [vmem:[%s4 + $0x10] sm:$0xff]
        %v805 = vld [vmem:[%s4 + $0x18] sm:$0xff]
        %v806 = vld [vmem:[%s4 + $0x20] sm:$0xff]
        %v807 = vld [vmem:[%s4 + $0x28] sm:$0xff]
        %v808 = vld [vmem:[%s4 + $0x30] sm:$0xff]
        %v809 = vld [vmem:[%s4 + $0x38] sm:$0xff]
        %v810 = vld [vmem:[%s4 + $0x40] sm:$0xff]
        %v811 = vld [vmem:[%s4 + $0x48] sm:$0xff]
        %v812 = vld [vmem:[%s4 + $0x50] sm:$0xff]
        %v813 = vld [vmem:[%s4 + $0x58] sm:$0xff]
        %v814 = vld [vmem:[%s4 + $0x60] sm:$0xff]
        %v815 = vld [vmem:[%s4 + $0x68] sm:$0xff]
        %v816 = vld [vmem:[%s4 + $0x70] sm:$0xff]
        %v817 = vld [vmem:[%s4 + $0x78] sm:$0xff]
        %819 = vset.pattern.permute.xlu0 0
        %820 = vperm.xlu0 %819, %v802
        %v821 = vpop.permute.xlu0 %820
        %824 = vset.pattern.permute.xlu0 0
        %825 = vperm.xlu0 %824, %v803
        %v826 = vpop.permute.xlu0 %825
        %829 = vset.pattern.permute.xlu0 0
        %830 = vperm.xlu0 %829, %v804
        %v831 = vpop.permute.xlu0 %830
        %834 = vset.pattern.permute.xlu0 0
        %835 = vperm.xlu0 %834, %v805
        %v836 = vpop.permute.xlu0 %835
        %839 = vset.pattern.permute.xlu0 0
        %840 = vperm.xlu0 %839, %v806
        %v841 = vpop.permute.xlu0 %840
        %844 = vset.pattern.permute.xlu0 0
        %845 = vperm.xlu0 %844, %v807
        %v846 = vpop.permute.xlu0 %845
        %849 = vset.pattern.permute.xlu0 0
        %850 = vperm.xlu0 %849, %v808
        %v851 = vpop.permute.xlu0 %850
        %854 = vset.pattern.permute.xlu0 0
        %855 = vperm.xlu0 %854, %v809
        %v856 = vpop.permute.xlu0 %855
        %859 = vset.pattern.permute.xlu0 0
        %860 = vperm.xlu0 %859, %v810
        %v861 = vpop.permute.xlu0 %860
        %864 = vset.pattern.permute.xlu0 0
        %865 = vperm.xlu0 %864, %v811
        %v866 = vpop.permute.xlu0 %865
        %869 = vset.pattern.permute.xlu0 0
        %870 = vperm.xlu0 %869, %v812
        %v871 = vpop.permute.xlu0 %870
        %874 = vset.pattern.permute.xlu0 0
        %875 = vperm.xlu0 %874, %v813
        %v876 = vpop.permute.xlu0 %875
        %879 = vset.pattern.permute.xlu0 0
        %880 = vperm.xlu0 %879, %v814
        %v881 = vpop.permute.xlu0 %880
        %884 = vset.pattern.permute.xlu0 0
        %885 = vperm.xlu0 %884, %v815
        %v886 = vpop.permute.xlu0 %885
        %889 = vset.pattern.permute.xlu0 0
        %890 = vperm.xlu0 %889, %v816
        %v891 = vpop.permute.xlu0 %890
        %894 = vset.pattern.permute.xlu0 0
        %895 = vperm.xlu0 %894, %v817
        %v896 = vpop.permute.xlu0 %895
        %vm898 = vcmask 523264
        %v900 = vsel %vm898, %v786, 0
        %v903 = vsel %vm898, %v787, 0
        %v906 = vsel %vm898, %v788, 0
        %v909 = vsel %vm898, %v789, 0
        %v912 = vsel %vm898, %v790, 0
        %v915 = vsel %vm898, %v791, 0
        %v918 = vsel %vm898, %v792, 0
        %v921 = vsel %vm898, %v793, 0
        %v924 = vsel %vm898, %v794, 0
        %v927 = vsel %vm898, %v795, 0
        %v930 = vsel %vm898, %v796, 0
        %v933 = vsel %vm898, %v797, 0
        %v936 = vsel %vm898, %v798, 0
        %v939 = vsel %vm898, %v799, 0
        %v942 = vsel %vm898, %v800, 0
        %v945 = vsel %vm898, %v801, 0
        %947 = vmatprep.subr.mxu0 0.0
        %948 = vmatpush1.msra.mxu0 0.0
        %949 = vmatprep.subr.mxu0 0.0
        %950 = vmatpush1.msra.mxu0 0.0
        %951 = vmatprep.subr.mxu0 0.0
        %952 = vmatpush1.msra.mxu0 0.0
        %953 = vmatprep.subr.mxu0 0.0
        %954 = vmatpush1.msra.mxu0 0.0
        %955 = vmatprep.subr.mxu0 0.0
        %956 = vmatpush1.msra.mxu0 0.0
        %957 = vmatprep.subr.mxu0 0.0
        %958 = vmatpush1.msra.mxu0 0.0
        %959 = vmatprep.subr.mxu0 0.0
        %960 = vmatpush1.msra.mxu0 0.0
        %961 = vmatprep.subr.mxu0 0.0
        %962 = vmatpush1.msra.mxu0 0.0
        %963 = vmatprep.subr.mxu0 %v779
        %964 = vmatpush1.msra.mxu0 %v778
        %965 = vmatprep.subr.mxu0 %v771
        %966 = vmatpush1.msra.mxu0 %v770
        %967 = vmatprep.subr.mxu0 %v763
        %968 = vmatpush1.msra.mxu0 %v762
        %969 = vmatprep.subr.mxu0 %v755
        %970 = vmatpush1.msra.mxu0 %v754
        %971 = vmatprep.subr.mxu0 %v747
        %972 = vmatpush1.msra.mxu0 %v746
        %973 = vmatprep.subr.mxu0 %v739
        %974 = vmatpush1.msra.mxu0 %v738
        %975 = vmatprep.subr.mxu0 %v731
        %976 = vmatpush1.msra.mxu0 %v730
        %977 = vmatprep.subr.mxu0 %v723
        %978 = vmatpush1.msra.mxu0 %v722
        %979 = vmatprep.subr.mxu0 0.0
        %980 = vmatpush2.msra.mxu0 0.0
        %981 = vmatprep.subr.mxu0 0.0
        %982 = vmatpush2.msra.mxu0 0.0
        %983 = vmatprep.subr.mxu0 0.0
        %984 = vmatpush2.msra.mxu0 0.0
        %985 = vmatprep.subr.mxu0 0.0
        %986 = vmatpush2.msra.mxu0 0.0
        %987 = vmatprep.subr.mxu0 0.0
        %988 = vmatpush2.msra.mxu0 0.0
        %989 = vmatprep.subr.mxu0 0.0
        %990 = vmatpush2.msra.mxu0 0.0
        %991 = vmatprep.subr.mxu0 0.0
        %992 = vmatpush2.msra.mxu0 0.0
        %993 = vmatprep.subr.mxu0 0.0
        %994 = vmatpush2.msra.mxu0 0.0
        %995 = vmatprep.subr.mxu0 0.0
        %996 = vmatpush2.msra.mxu0 0.0
        %997 = vmatprep.subr.mxu0 0.0
        %998 = vmatpush2.msra.mxu0 0.0
        %999 = vmatprep.subr.mxu0 0.0
        %1000 = vmatpush2.msra.mxu0 0.0
        %1001 = vmatprep.subr.mxu0 0.0
        %1002 = vmatpush2.msra.mxu0 0.0
        %1003 = vmatprep.subr.mxu0 0.0
        %1004 = vmatpush2.msra.mxu0 0.0
        %1005 = vmatprep.subr.mxu0 0.0
        %1006 = vmatpush2.msra.mxu0 0.0
        %1007 = vmatprep.subr.mxu0 0.0
        %1008 = vmatpush2.msra.mxu0 0.0
        %1009 = vmatprep.subr.mxu0 0.0
        %1010 = vmatpush2.msra.mxu0 0.0
        %1011 = vmatprep.mubr.f32.mxu0 0.0
        %1012 = vmatmul.mubr.f32.gmra.mxu0 %v900
        %v1013 = vpop.f32.mrf.mxu0
        %v1014 = vadd.f32 %v821, %v1013
        %v1015 = vpop.f32.mrf.mxu0
        %v1016 = vadd.f32 %v821, %v1015
        %1017 = vmatprep.mubr.f32.mxu0 0.0
        %1018 = vmatmul.mubr.f32.gmra.mxu0 %v903
        %v1019 = vpop.f32.mrf.mxu0
        %v1020 = vadd.f32 %v826, %v1019
        %v1021 = vpop.f32.mrf.mxu0
        %v1022 = vadd.f32 %v826, %v1021
        %1023 = vmatprep.mubr.f32.mxu0 0.0
        %1024 = vmatmul.mubr.f32.gmra.mxu0 %v906
        %v1025 = vpop.f32.mrf.mxu0
        %v1026 = vadd.f32 %v831, %v1025
        %v1027 = vpop.f32.mrf.mxu0
        %v1028 = vadd.f32 %v831, %v1027
        %1029 = vmatprep.mubr.f32.mxu0 0.0
        %1030 = vmatmul.mubr.f32.gmra.mxu0 %v909
        %v1031 = vpop.f32.mrf.mxu0
        %v1032 = vadd.f32 %v836, %v1031
        %v1033 = vpop.f32.mrf.mxu0
        %v1034 = vadd.f32 %v836, %v1033
        %1035 = vmatprep.mubr.f32.mxu0 0.0
        %1036 = vmatmul.mubr.f32.gmra.mxu0 %v912
        %v1037 = vpop.f32.mrf.mxu0
        %v1038 = vadd.f32 %v841, %v1037
        %v1039 = vpop.f32.mrf.mxu0
        %v1040 = vadd.f32 %v841, %v1039
        %1041 = vmatprep.mubr.f32.mxu0 0.0
        %1042 = vmatmul.mubr.f32.gmra.mxu0 %v915
        %v1043 = vpop.f32.mrf.mxu0
        %v1044 = vadd.f32 %v846, %v1043
        %v1045 = vpop.f32.mrf.mxu0
        %v1046 = vadd.f32 %v846, %v1045
        %1047 = vmatprep.mubr.f32.mxu0 0.0
        %1048 = vmatmul.mubr.f32.gmra.mxu0 %v918
        %v1049 = vpop.f32.mrf.mxu0
        %v1050 = vadd.f32 %v851, %v1049
        %v1051 = vpop.f32.mrf.mxu0
        %v1052 = vadd.f32 %v851, %v1051
        %1053 = vmatprep.mubr.f32.mxu0 0.0
        %1054 = vmatmul.mubr.f32.gmra.mxu0 %v921
        %v1055 = vpop.f32.mrf.mxu0
        %v1056 = vadd.f32 %v856, %v1055
        %v1057 = vpop.f32.mrf.mxu0
        %v1058 = vadd.f32 %v856, %v1057
        %1059 = vmatprep.mubr.f32.mxu0 0.0
        %1060 = vmatmul.mubr.f32.gmra.mxu0 %v924
        %v1061 = vpop.f32.mrf.mxu0
        %v1062 = vadd.f32 %v861, %v1061
        %v1063 = vpop.f32.mrf.mxu0
        %v1064 = vadd.f32 %v861, %v1063
        %1065 = vmatprep.mubr.f32.mxu0 0.0
        %1066 = vmatmul.mubr.f32.gmra.mxu0 %v927
        %v1067 = vpop.f32.mrf.mxu0
        %v1068 = vadd.f32 %v866, %v1067
        %v1069 = vpop.f32.mrf.mxu0
        %v1070 = vadd.f32 %v866, %v1069
        %1071 = vmatprep.mubr.f32.mxu0 0.0
        %1072 = vmatmul.mubr.f32.gmra.mxu0 %v930
        %v1073 = vpop.f32.mrf.mxu0
        %v1074 = vadd.f32 %v871, %v1073
        %v1075 = vpop.f32.mrf.mxu0
        %v1076 = vadd.f32 %v871, %v1075
        %1077 = vmatprep.mubr.f32.mxu0 0.0
        %1078 = vmatmul.mubr.f32.gmra.mxu0 %v933
        %v1079 = vpop.f32.mrf.mxu0
        %v1080 = vadd.f32 %v876, %v1079
        %v1081 = vpop.f32.mrf.mxu0
        %v1082 = vadd.f32 %v876, %v1081
        %1083 = vmatprep.mubr.f32.mxu0 0.0
        %1084 = vmatmul.mubr.f32.gmra.mxu0 %v936
        %v1085 = vpop.f32.mrf.mxu0
        %v1086 = vadd.f32 %v881, %v1085
        %v1087 = vpop.f32.mrf.mxu0
        %v1088 = vadd.f32 %v881, %v1087
        %1089 = vmatprep.mubr.f32.mxu0 0.0
        %1090 = vmatmul.mubr.f32.gmra.mxu0 %v939
        %v1091 = vpop.f32.mrf.mxu0
        %v1092 = vadd.f32 %v886, %v1091
        %v1093 = vpop.f32.mrf.mxu0
        %v1094 = vadd.f32 %v886, %v1093
        %1095 = vmatprep.mubr.f32.mxu0 0.0
        %1096 = vmatmul.mubr.f32.gmra.mxu0 %v942
        %v1097 = vpop.f32.mrf.mxu0
        %v1098 = vadd.f32 %v891, %v1097
        %v1099 = vpop.f32.mrf.mxu0
        %v1100 = vadd.f32 %v891, %v1099
        %1101 = vmatprep.mubr.f32.mxu0 0.0
        %1102 = vmatmul.mubr.f32.gmra.mxu0 %v945
        %v1103 = vpop.f32.mrf.mxu0
        %v1104 = vadd.f32 %v896, %v1103
        %v1105 = vpop.f32.mrf.mxu0
        %v1106 = vadd.f32 %v896, %v1105
        %1107 = vdwg.mxu0
        %1108 = vmatprep.subr.mxu0 0.0
        %1109 = vmatpush1.msra.mxu0 0.0
        %1110 = vmatprep.subr.mxu0 0.0
        %1111 = vmatpush1.msra.mxu0 0.0
        %1112 = vmatprep.subr.mxu0 0.0
        %1113 = vmatpush1.msra.mxu0 0.0
        %1114 = vmatprep.subr.mxu0 0.0
        %1115 = vmatpush1.msra.mxu0 0.0
        %1116 = vmatprep.subr.mxu0 0.0
        %1117 = vmatpush1.msra.mxu0 0.0
        %1118 = vmatprep.subr.mxu0 0.0
        %1119 = vmatpush1.msra.mxu0 0.0
        %1120 = vmatprep.subr.mxu0 0.0
        %1121 = vmatpush1.msra.mxu0 0.0
        %1122 = vmatprep.subr.mxu0 0.0
        %1123 = vmatpush1.msra.mxu0 0.0
        %1124 = vmatprep.subr.mxu0 %v781
        %1125 = vmatpush1.msra.mxu0 %v780
        %1126 = vmatprep.subr.mxu0 %v773
        %1127 = vmatpush1.msra.mxu0 %v772
        %1128 = vmatprep.subr.mxu0 %v765
        %1129 = vmatpush1.msra.mxu0 %v764
        %1130 = vmatprep.subr.mxu0 %v757
        %1131 = vmatpush1.msra.mxu0 %v756
        %1132 = vmatprep.subr.mxu0 %v749
        %1133 = vmatpush1.msra.mxu0 %v748
        %1134 = vmatprep.subr.mxu0 %v741
        %1135 = vmatpush1.msra.mxu0 %v740
        %1136 = vmatprep.subr.mxu0 %v733
        %1137 = vmatpush1.msra.mxu0 %v732
        %1138 = vmatprep.subr.mxu0 %v725
        %1139 = vmatpush1.msra.mxu0 %v724
        %1140 = vmatprep.subr.mxu0 0.0
        %1141 = vmatpush2.msra.mxu0 0.0
        %1142 = vmatprep.subr.mxu0 0.0
        %1143 = vmatpush2.msra.mxu0 0.0
        %1144 = vmatprep.subr.mxu0 0.0
        %1145 = vmatpush2.msra.mxu0 0.0
        %1146 = vmatprep.subr.mxu0 0.0
        %1147 = vmatpush2.msra.mxu0 0.0
        %1148 = vmatprep.subr.mxu0 0.0
        %1149 = vmatpush2.msra.mxu0 0.0
        %1150 = vmatprep.subr.mxu0 0.0
        %1151 = vmatpush2.msra.mxu0 0.0
        %1152 = vmatprep.subr.mxu0 0.0
        %1153 = vmatpush2.msra.mxu0 0.0
        %1154 = vmatprep.subr.mxu0 0.0
        %1155 = vmatpush2.msra.mxu0 0.0
        %1156 = vmatprep.subr.mxu0 0.0
        %1157 = vmatpush2.msra.mxu0 0.0
        %1158 = vmatprep.subr.mxu0 0.0
        %1159 = vmatpush2.msra.mxu0 0.0
        %1160 = vmatprep.subr.mxu0 0.0
        %1161 = vmatpush2.msra.mxu0 0.0
        %1162 = vmatprep.subr.mxu0 0.0
        %1163 = vmatpush2.msra.mxu0 0.0
        %1164 = vmatprep.subr.mxu0 0.0
        %1165 = vmatpush2.msra.mxu0 0.0
        %1166 = vmatprep.subr.mxu0 0.0
        %1167 = vmatpush2.msra.mxu0 0.0
        %1168 = vmatprep.subr.mxu0 0.0
        %1169 = vmatpush2.msra.mxu0 0.0
        %1170 = vmatprep.subr.mxu0 0.0
        %1171 = vmatpush2.msra.mxu0 0.0
        %1172 = vmatprep.mubr.f32.mxu0 0.0
        %1173 = vmatmul.mubr.f32.gmra.mxu0 %v900
        %v1174 = vpop.f32.mrf.mxu0
        %v1175 = vadd.f32 %v821, %v1174
        %v1176 = vpop.f32.mrf.mxu0
        %v1177 = vadd.f32 %v821, %v1176
        %1178 = vmatprep.mubr.f32.mxu0 0.0
        %1179 = vmatmul.mubr.f32.gmra.mxu0 %v903
        %v1180 = vpop.f32.mrf.mxu0
        %v1181 = vadd.f32 %v826, %v1180
        %v1182 = vpop.f32.mrf.mxu0
        %v1183 = vadd.f32 %v826, %v1182
        %1184 = vmatprep.mubr.f32.mxu0 0.0
        %1185 = vmatmul.mubr.f32.gmra.mxu0 %v906
        %v1186 = vpop.f32.mrf.mxu0
        %v1187 = vadd.f32 %v831, %v1186
        %v1188 = vpop.f32.mrf.mxu0
        %v1189 = vadd.f32 %v831, %v1188
        %1190 = vmatprep.mubr.f32.mxu0 0.0
        %1191 = vmatmul.mubr.f32.gmra.mxu0 %v909
        %v1192 = vpop.f32.mrf.mxu0
        %v1193 = vadd.f32 %v836, %v1192
        %v1194 = vpop.f32.mrf.mxu0
        %v1195 = vadd.f32 %v836, %v1194
        %1196 = vmatprep.mubr.f32.mxu0 0.0
        %1197 = vmatmul.mubr.f32.gmra.mxu0 %v912
        %v1198 = vpop.f32.mrf.mxu0
        %v1199 = vadd.f32 %v841, %v1198
        %v1200 = vpop.f32.mrf.mxu0
        %v1201 = vadd.f32 %v841, %v1200
        %1202 = vmatprep.mubr.f32.mxu0 0.0
        %1203 = vmatmul.mubr.f32.gmra.mxu0 %v915
        %v1204 = vpop.f32.mrf.mxu0
        %v1205 = vadd.f32 %v846, %v1204
        %v1206 = vpop.f32.mrf.mxu0
        %v1207 = vadd.f32 %v846, %v1206
        %1208 = vmatprep.mubr.f32.mxu0 0.0
        %1209 = vmatmul.mubr.f32.gmra.mxu0 %v918
        %v1210 = vpop.f32.mrf.mxu0
        %v1211 = vadd.f32 %v851, %v1210
        %v1212 = vpop.f32.mrf.mxu0
        %v1213 = vadd.f32 %v851, %v1212
        %1214 = vmatprep.mubr.f32.mxu0 0.0
        %1215 = vmatmul.mubr.f32.gmra.mxu0 %v921
        %v1216 = vpop.f32.mrf.mxu0
        %v1217 = vadd.f32 %v856, %v1216
        %v1218 = vpop.f32.mrf.mxu0
        %v1219 = vadd.f32 %v856, %v1218
        %1220 = vmatprep.mubr.f32.mxu0 0.0
        %1221 = vmatmul.mubr.f32.gmra.mxu0 %v924
        %v1222 = vpop.f32.mrf.mxu0
        %v1223 = vadd.f32 %v861, %v1222
        %v1224 = vpop.f32.mrf.mxu0
        %v1225 = vadd.f32 %v861, %v1224
        %1226 = vmatprep.mubr.f32.mxu0 0.0
        %1227 = vmatmul.mubr.f32.gmra.mxu0 %v927
        %v1228 = vpop.f32.mrf.mxu0
        %v1229 = vadd.f32 %v866, %v1228
        %v1230 = vpop.f32.mrf.mxu0
        %v1231 = vadd.f32 %v866, %v1230
        %1232 = vmatprep.mubr.f32.mxu0 0.0
        %1233 = vmatmul.mubr.f32.gmra.mxu0 %v930
        %v1234 = vpop.f32.mrf.mxu0
        %v1235 = vadd.f32 %v871, %v1234
        %v1236 = vpop.f32.mrf.mxu0
        %v1237 = vadd.f32 %v871, %v1236
        %1238 = vmatprep.mubr.f32.mxu0 0.0
        %1239 = vmatmul.mubr.f32.gmra.mxu0 %v933
        %v1240 = vpop.f32.mrf.mxu0
        %v1241 = vadd.f32 %v876, %v1240
        %v1242 = vpop.f32.mrf.mxu0
        %v1243 = vadd.f32 %v876, %v1242
        %1244 = vmatprep.mubr.f32.mxu0 0.0
        %1245 = vmatmul.mubr.f32.gmra.mxu0 %v936
        %v1246 = vpop.f32.mrf.mxu0
        %v1247 = vadd.f32 %v881, %v1246
        %v1248 = vpop.f32.mrf.mxu0
        %v1249 = vadd.f32 %v881, %v1248
        %1250 = vmatprep.mubr.f32.mxu0 0.0
        %1251 = vmatmul.mubr.f32.gmra.mxu0 %v939
        %v1252 = vpop.f32.mrf.mxu0
        %v1253 = vadd.f32 %v886, %v1252
        %v1254 = vpop.f32.mrf.mxu0
        %v1255 = vadd.f32 %v886, %v1254
        %1256 = vmatprep.mubr.f32.mxu0 0.0
        %1257 = vmatmul.mubr.f32.gmra.mxu0 %v942
        %v1258 = vpop.f32.mrf.mxu0
        %v1259 = vadd.f32 %v891, %v1258
        %v1260 = vpop.f32.mrf.mxu0
        %v1261 = vadd.f32 %v891, %v1260
        %1262 = vmatprep.mubr.f32.mxu0 0.0
        %1263 = vmatmul.mubr.f32.gmra.mxu0 %v945
        %v1264 = vpop.f32.mrf.mxu0
        %v1265 = vadd.f32 %v896, %v1264
        %v1266 = vpop.f32.mrf.mxu0
        %v1267 = vadd.f32 %v896, %v1266
        %1268 = vdwg.mxu0
        %1269 = vmatprep.subr.mxu0 0.0
        %1270 = vmatpush1.msra.mxu0 0.0
        %1271 = vmatprep.subr.mxu0 0.0
        %1272 = vmatpush1.msra.mxu0 0.0
        %1273 = vmatprep.subr.mxu0 0.0
        %1274 = vmatpush1.msra.mxu0 0.0
        %1275 = vmatprep.subr.mxu0 0.0
        %1276 = vmatpush1.msra.mxu0 0.0
        %1277 = vmatprep.subr.mxu0 0.0
        %1278 = vmatpush1.msra.mxu0 0.0
        %1279 = vmatprep.subr.mxu0 0.0
        %1280 = vmatpush1.msra.mxu0 0.0
        %1281 = vmatprep.subr.mxu0 0.0
        %1282 = vmatpush1.msra.mxu0 0.0
        %1283 = vmatprep.subr.mxu0 0.0
        %1284 = vmatpush1.msra.mxu0 0.0
        %1285 = vmatprep.subr.mxu0 %v783
        %1286 = vmatpush1.msra.mxu0 %v782
        %1287 = vmatprep.subr.mxu0 %v775
        %1288 = vmatpush1.msra.mxu0 %v774
        %1289 = vmatprep.subr.mxu0 %v767
        %1290 = vmatpush1.msra.mxu0 %v766
        %1291 = vmatprep.subr.mxu0 %v759
        %1292 = vmatpush1.msra.mxu0 %v758
        %1293 = vmatprep.subr.mxu0 %v751
        %1294 = vmatpush1.msra.mxu0 %v750
        %1295 = vmatprep.subr.mxu0 %v743
        %1296 = vmatpush1.msra.mxu0 %v742
        %1297 = vmatprep.subr.mxu0 %v735
        %1298 = vmatpush1.msra.mxu0 %v734
        %1299 = vmatprep.subr.mxu0 %v727
        %1300 = vmatpush1.msra.mxu0 %v726
        %1301 = vmatprep.subr.mxu0 0.0
        %1302 = vmatpush2.msra.mxu0 0.0
        %1303 = vmatprep.subr.mxu0 0.0
        %1304 = vmatpush2.msra.mxu0 0.0
        %1305 = vmatprep.subr.mxu0 0.0
        %1306 = vmatpush2.msra.mxu0 0.0
        %1307 = vmatprep.subr.mxu0 0.0
        %1308 = vmatpush2.msra.mxu0 0.0
        %1309 = vmatprep.subr.mxu0 0.0
        %1310 = vmatpush2.msra.mxu0 0.0
        %1311 = vmatprep.subr.mxu0 0.0
        %1312 = vmatpush2.msra.mxu0 0.0
        %1313 = vmatprep.subr.mxu0 0.0
        %1314 = vmatpush2.msra.mxu0 0.0
        %1315 = vmatprep.subr.mxu0 0.0
        %1316 = vmatpush2.msra.mxu0 0.0
        %1317 = vmatprep.subr.mxu0 0.0
        %1318 = vmatpush2.msra.mxu0 0.0
        %1319 = vmatprep.subr.mxu0 0.0
        %1320 = vmatpush2.msra.mxu0 0.0
        %1321 = vmatprep.subr.mxu0 0.0
        %1322 = vmatpush2.msra.mxu0 0.0
        %1323 = vmatprep.subr.mxu0 0.0
        %1324 = vmatpush2.msra.mxu0 0.0
        %1325 = vmatprep.subr.mxu0 0.0
        %1326 = vmatpush2.msra.mxu0 0.0
        %1327 = vmatprep.subr.mxu0 0.0
        %1328 = vmatpush2.msra.mxu0 0.0
        %1329 = vmatprep.subr.mxu0 0.0
        %1330 = vmatpush2.msra.mxu0 0.0
        %1331 = vmatprep.subr.mxu0 0.0
        %1332 = vmatpush2.msra.mxu0 0.0
        %1333 = vmatprep.mubr.f32.mxu0 0.0
        %1334 = vmatmul.mubr.f32.gmra.mxu0 %v900
        %v1335 = vpop.f32.mrf.mxu0
        %v1336 = vadd.f32 %v821, %v1335
        %v1337 = vpop.f32.mrf.mxu0
        %v1338 = vadd.f32 %v821, %v1337
        %1339 = vmatprep.mubr.f32.mxu0 0.0
        %1340 = vmatmul.mubr.f32.gmra.mxu0 %v903
        %v1341 = vpop.f32.mrf.mxu0
        %v1342 = vadd.f32 %v826, %v1341
        %v1343 = vpop.f32.mrf.mxu0
        %v1344 = vadd.f32 %v826, %v1343
        %1345 = vmatprep.mubr.f32.mxu0 0.0
        %1346 = vmatmul.mubr.f32.gmra.mxu0 %v906
        %v1347 = vpop.f32.mrf.mxu0
        %v1348 = vadd.f32 %v831, %v1347
        %v1349 = vpop.f32.mrf.mxu0
        %v1350 = vadd.f32 %v831, %v1349
        %1351 = vmatprep.mubr.f32.mxu0 0.0
        %1352 = vmatmul.mubr.f32.gmra.mxu0 %v909
        %v1353 = vpop.f32.mrf.mxu0
        %v1354 = vadd.f32 %v836, %v1353
        %v1355 = vpop.f32.mrf.mxu0
        %v1356 = vadd.f32 %v836, %v1355
        %1357 = vmatprep.mubr.f32.mxu0 0.0
        %1358 = vmatmul.mubr.f32.gmra.mxu0 %v912
        %v1359 = vpop.f32.mrf.mxu0
        %v1360 = vadd.f32 %v841, %v1359
        %v1361 = vpop.f32.mrf.mxu0
        %v1362 = vadd.f32 %v841, %v1361
        %1363 = vmatprep.mubr.f32.mxu0 0.0
        %1364 = vmatmul.mubr.f32.gmra.mxu0 %v915
        %v1365 = vpop.f32.mrf.mxu0
        %v1366 = vadd.f32 %v846, %v1365
        %v1367 = vpop.f32.mrf.mxu0
        %v1368 = vadd.f32 %v846, %v1367
        %1369 = vmatprep.mubr.f32.mxu0 0.0
        %1370 = vmatmul.mubr.f32.gmra.mxu0 %v918
        %v1371 = vpop.f32.mrf.mxu0
        %v1372 = vadd.f32 %v851, %v1371
        %v1373 = vpop.f32.mrf.mxu0
        %v1374 = vadd.f32 %v851, %v1373
        %1375 = vmatprep.mubr.f32.mxu0 0.0
        %1376 = vmatmul.mubr.f32.gmra.mxu0 %v921
        %v1377 = vpop.f32.mrf.mxu0
        %v1378 = vadd.f32 %v856, %v1377
        %v1379 = vpop.f32.mrf.mxu0
        %v1380 = vadd.f32 %v856, %v1379
        %1381 = vmatprep.mubr.f32.mxu0 0.0
        %1382 = vmatmul.mubr.f32.gmra.mxu0 %v924
        %v1383 = vpop.f32.mrf.mxu0
        %v1384 = vadd.f32 %v861, %v1383
        %v1385 = vpop.f32.mrf.mxu0
        %v1386 = vadd.f32 %v861, %v1385
        %1387 = vmatprep.mubr.f32.mxu0 0.0
        %1388 = vmatmul.mubr.f32.gmra.mxu0 %v927
        %v1389 = vpop.f32.mrf.mxu0
        %v1390 = vadd.f32 %v866, %v1389
        %v1391 = vpop.f32.mrf.mxu0
        %v1392 = vadd.f32 %v866, %v1391
        %1393 = vmatprep.mubr.f32.mxu0 0.0
        %1394 = vmatmul.mubr.f32.gmra.mxu0 %v930
        %v1395 = vpop.f32.mrf.mxu0
        %v1396 = vadd.f32 %v871, %v1395
        %v1397 = vpop.f32.mrf.mxu0
        %v1398 = vadd.f32 %v871, %v1397
        %1399 = vmatprep.mubr.f32.mxu0 0.0
        %1400 = vmatmul.mubr.f32.gmra.mxu0 %v933
        %v1401 = vpop.f32.mrf.mxu0
        %v1402 = vadd.f32 %v876, %v1401
        %v1403 = vpop.f32.mrf.mxu0
        %v1404 = vadd.f32 %v876, %v1403
        %1405 = vmatprep.mubr.f32.mxu0 0.0
        %1406 = vmatmul.mubr.f32.gmra.mxu0 %v936
        %v1407 = vpop.f32.mrf.mxu0
        %v1408 = vadd.f32 %v881, %v1407
        %v1409 = vpop.f32.mrf.mxu0
        %v1410 = vadd.f32 %v881, %v1409
        %1411 = vmatprep.mubr.f32.mxu0 0.0
        %1412 = vmatmul.mubr.f32.gmra.mxu0 %v939
        %v1413 = vpop.f32.mrf.mxu0
        %v1414 = vadd.f32 %v886, %v1413
        %v1415 = vpop.f32.mrf.mxu0
        %v1416 = vadd.f32 %v886, %v1415
        %1417 = vmatprep.mubr.f32.mxu0 0.0
        %1418 = vmatmul.mubr.f32.gmra.mxu0 %v942
        %v1419 = vpop.f32.mrf.mxu0
        %v1420 = vadd.f32 %v891, %v1419
        %v1421 = vpop.f32.mrf.mxu0
        %v1422 = vadd.f32 %v891, %v1421
        %1423 = vmatprep.mubr.f32.mxu0 0.0
        %1424 = vmatmul.mubr.f32.gmra.mxu0 %v945
        %v1425 = vpop.f32.mrf.mxu0
        %v1426 = vadd.f32 %v896, %v1425
        %v1427 = vpop.f32.mrf.mxu0
        %v1428 = vadd.f32 %v896, %v1427
        %1429 = vdwg.mxu0
        %1430 = vmatprep.subr.mxu0 0.0
        %1431 = vmatpush1.msra.mxu0 0.0
        %1432 = vmatprep.subr.mxu0 0.0
        %1433 = vmatpush1.msra.mxu0 0.0
        %1434 = vmatprep.subr.mxu0 0.0
        %1435 = vmatpush1.msra.mxu0 0.0
        %1436 = vmatprep.subr.mxu0 0.0
        %1437 = vmatpush1.msra.mxu0 0.0
        %1438 = vmatprep.subr.mxu0 0.0
        %1439 = vmatpush1.msra.mxu0 0.0
        %1440 = vmatprep.subr.mxu0 0.0
        %1441 = vmatpush1.msra.mxu0 0.0
        %1442 = vmatprep.subr.mxu0 0.0
        %1443 = vmatpush1.msra.mxu0 0.0
        %1444 = vmatprep.subr.mxu0 0.0
        %1445 = vmatpush1.msra.mxu0 0.0
        %1446 = vmatprep.subr.mxu0 %v785
        %1447 = vmatpush1.msra.mxu0 %v784
        %1448 = vmatprep.subr.mxu0 %v777
        %1449 = vmatpush1.msra.mxu0 %v776
        %1450 = vmatprep.subr.mxu0 %v769
        %1451 = vmatpush1.msra.mxu0 %v768
        %1452 = vmatprep.subr.mxu0 %v761
        %1453 = vmatpush1.msra.mxu0 %v760
        %1454 = vmatprep.subr.mxu0 %v753
        %1455 = vmatpush1.msra.mxu0 %v752
        %1456 = vmatprep.subr.mxu0 %v745
        %1457 = vmatpush1.msra.mxu0 %v744
        %1458 = vmatprep.subr.mxu0 %v737
        %1459 = vmatpush1.msra.mxu0 %v736
        %1460 = vmatprep.subr.mxu0 %v729
        %1461 = vmatpush1.msra.mxu0 %v728
        %1462 = vmatprep.subr.mxu0 0.0
        %1463 = vmatpush2.msra.mxu0 0.0
        %1464 = vmatprep.subr.mxu0 0.0
        %1465 = vmatpush2.msra.mxu0 0.0
        %1466 = vmatprep.subr.mxu0 0.0
        %1467 = vmatpush2.msra.mxu0 0.0
        %1468 = vmatprep.subr.mxu0 0.0
        %1469 = vmatpush2.msra.mxu0 0.0
        %1470 = vmatprep.subr.mxu0 0.0
        %1471 = vmatpush2.msra.mxu0 0.0
        %1472 = vmatprep.subr.mxu0 0.0
        %1473 = vmatpush2.msra.mxu0 0.0
        %1474 = vmatprep.subr.mxu0 0.0
        %1475 = vmatpush2.msra.mxu0 0.0
        %1476 = vmatprep.subr.mxu0 0.0
        %1477 = vmatpush2.msra.mxu0 0.0
        %1478 = vmatprep.subr.mxu0 0.0
        %1479 = vmatpush2.msra.mxu0 0.0
        %1480 = vmatprep.subr.mxu0 0.0
        %1481 = vmatpush2.msra.mxu0 0.0
        %1482 = vmatprep.subr.mxu0 0.0
        %1483 = vmatpush2.msra.mxu0 0.0
        %1484 = vmatprep.subr.mxu0 0.0
        %1485 = vmatpush2.msra.mxu0 0.0
        %1486 = vmatprep.subr.mxu0 0.0
        %1487 = vmatpush2.msra.mxu0 0.0
        %1488 = vmatprep.subr.mxu0 0.0
        %1489 = vmatpush2.msra.mxu0 0.0
        %1490 = vmatprep.subr.mxu0 0.0
        %1491 = vmatpush2.msra.mxu0 0.0
        %1492 = vmatprep.subr.mxu0 0.0
        %1493 = vmatpush2.msra.mxu0 0.0
        %1494 = vmatprep.mubr.f32.mxu0 0.0
        %1495 = vmatmul.mubr.f32.gmra.mxu0 %v900
        %v1496 = vpop.f32.mrf.mxu0
        %v1497 = vadd.f32 %v821, %v1496
        %v1498 = vpop.f32.mrf.mxu0
        %v1499 = vadd.f32 %v821, %v1498
        %1500 = vmatprep.mubr.f32.mxu0 0.0
        %1501 = vmatmul.mubr.f32.gmra.mxu0 %v903
        %v1502 = vpop.f32.mrf.mxu0
        %v1503 = vadd.f32 %v826, %v1502
        %v1504 = vpop.f32.mrf.mxu0
        %v1505 = vadd.f32 %v826, %v1504
        %1506 = vmatprep.mubr.f32.mxu0 0.0
        %1507 = vmatmul.mubr.f32.gmra.mxu0 %v906
        %v1508 = vpop.f32.mrf.mxu0
        %v1509 = vadd.f32 %v831, %v1508
        %v1510 = vpop.f32.mrf.mxu0
        %v1511 = vadd.f32 %v831, %v1510
        %1512 = vmatprep.mubr.f32.mxu0 0.0
        %1513 = vmatmul.mubr.f32.gmra.mxu0 %v909
        %v1514 = vpop.f32.mrf.mxu0
        %v1515 = vadd.f32 %v836, %v1514
        %v1516 = vpop.f32.mrf.mxu0
        %v1517 = vadd.f32 %v836, %v1516
        %1518 = vmatprep.mubr.f32.mxu0 0.0
        %1519 = vmatmul.mubr.f32.gmra.mxu0 %v912
        %v1520 = vpop.f32.mrf.mxu0
        %v1521 = vadd.f32 %v841, %v1520
        %v1522 = vpop.f32.mrf.mxu0
        %v1523 = vadd.f32 %v841, %v1522
        %1524 = vmatprep.mubr.f32.mxu0 0.0
        %1525 = vmatmul.mubr.f32.gmra.mxu0 %v915
        %v1526 = vpop.f32.mrf.mxu0
        %v1527 = vadd.f32 %v846, %v1526
        %v1528 = vpop.f32.mrf.mxu0
        %v1529 = vadd.f32 %v846, %v1528
        %1530 = vmatprep.mubr.f32.mxu0 0.0
        %1531 = vmatmul.mubr.f32.gmra.mxu0 %v918
        %v1532 = vpop.f32.mrf.mxu0
        %v1533 = vadd.f32 %v851, %v1532
        %v1534 = vpop.f32.mrf.mxu0
        %v1535 = vadd.f32 %v851, %v1534
        %1536 = vmatprep.mubr.f32.mxu0 0.0
        %1537 = vmatmul.mubr.f32.gmra.mxu0 %v921
        %v1538 = vpop.f32.mrf.mxu0
        %v1539 = vadd.f32 %v856, %v1538
        %v1540 = vpop.f32.mrf.mxu0
        %v1541 = vadd.f32 %v856, %v1540
        %1542 = vmatprep.mubr.f32.mxu0 0.0
        %1543 = vmatmul.mubr.f32.gmra.mxu0 %v924
        %v1544 = vpop.f32.mrf.mxu0
        %v1545 = vadd.f32 %v861, %v1544
        %v1546 = vpop.f32.mrf.mxu0
        %v1547 = vadd.f32 %v861, %v1546
        %1548 = vmatprep.mubr.f32.mxu0 0.0
        %1549 = vmatmul.mubr.f32.gmra.mxu0 %v927
        %v1550 = vpop.f32.mrf.mxu0
        %v1551 = vadd.f32 %v866, %v1550
        %v1552 = vpop.f32.mrf.mxu0
        %v1553 = vadd.f32 %v866, %v1552
        %1554 = vmatprep.mubr.f32.mxu0 0.0
        %1555 = vmatmul.mubr.f32.gmra.mxu0 %v930
        %v1556 = vpop.f32.mrf.mxu0
        %v1557 = vadd.f32 %v871, %v1556
        %v1558 = vpop.f32.mrf.mxu0
        %v1559 = vadd.f32 %v871, %v1558
        %1560 = vmatprep.mubr.f32.mxu0 0.0
        %1561 = vmatmul.mubr.f32.gmra.mxu0 %v933
        %v1562 = vpop.f32.mrf.mxu0
        %v1563 = vadd.f32 %v876, %v1562
        %v1564 = vpop.f32.mrf.mxu0
        %v1565 = vadd.f32 %v876, %v1564
        %1566 = vmatprep.mubr.f32.mxu0 0.0
        %1567 = vmatmul.mubr.f32.gmra.mxu0 %v936
        %v1568 = vpop.f32.mrf.mxu0
        %v1569 = vadd.f32 %v881, %v1568
        %v1570 = vpop.f32.mrf.mxu0
        %v1571 = vadd.f32 %v881, %v1570
        %1572 = vmatprep.mubr.f32.mxu0 0.0
        %1573 = vmatmul.mubr.f32.gmra.mxu0 %v939
        %v1574 = vpop.f32.mrf.mxu0
        %v1575 = vadd.f32 %v886, %v1574
        %v1576 = vpop.f32.mrf.mxu0
        %v1577 = vadd.f32 %v886, %v1576
        %1578 = vmatprep.mubr.f32.mxu0 0.0
        %1579 = vmatmul.mubr.f32.gmra.mxu0 %v942
        %v1580 = vpop.f32.mrf.mxu0
        %v1581 = vadd.f32 %v891, %v1580
        %v1582 = vpop.f32.mrf.mxu0
        %v1583 = vadd.f32 %v891, %v1582
        %1584 = vmatprep.mubr.f32.mxu0 0.0
        %1585 = vmatmul.mubr.f32.gmra.mxu0 %v945
        %v1586 = vpop.f32.mrf.mxu0
        %v1587 = vadd.f32 %v896, %v1586
        %v1588 = vpop.f32.mrf.mxu0
        %v1589 = vadd.f32 %v896, %v1588
        %1590 = vdwg.mxu0
        %v1591 = vmax.f32 %v1014, 0.0
        %v1592 = vmax.f32 %v1016, 0.0
        %v1593 = vmax.f32 %v1175, 0.0
        %v1594 = vmax.f32 %v1177, 0.0
        %v1595 = vmax.f32 %v1336, 0.0
        %v1596 = vmax.f32 %v1338, 0.0
        %v1597 = vmax.f32 %v1497, 0.0
        %v1598 = vmax.f32 %v1499, 0.0
        %v1599 = vmax.f32 %v1020, 0.0
        %v1600 = vmax.f32 %v1022, 0.0
        %v1601 = vmax.f32 %v1181, 0.0
        %v1602 = vmax.f32 %v1183, 0.0
        %v1603 = vmax.f32 %v1342, 0.0
        %v1604 = vmax.f32 %v1344, 0.0
        %v1605 = vmax.f32 %v1503, 0.0
        %v1606 = vmax.f32 %v1505, 0.0
        %v1607 = vmax.f32 %v1026, 0.0
        %v1608 = vmax.f32 %v1028, 0.0
        %v1609 = vmax.f32 %v1187, 0.0
        %v1610 = vmax.f32 %v1189, 0.0
        %v1611 = vmax.f32 %v1348, 0.0
        %v1612 = vmax.f32 %v1350, 0.0
        %v1613 = vmax.f32 %v1509, 0.0
        %v1614 = vmax.f32 %v1511, 0.0
        %v1615 = vmax.f32 %v1032, 0.0
        %v1616 = vmax.f32 %v1034, 0.0
        %v1617 = vmax.f32 %v1193, 0.0
        %v1618 = vmax.f32 %v1195, 0.0
        %v1619 = vmax.f32 %v1354, 0.0
        %v1620 = vmax.f32 %v1356, 0.0
        %v1621 = vmax.f32 %v1515, 0.0
        %v1622 = vmax.f32 %v1517, 0.0
        %v1623 = vmax.f32 %v1038, 0.0
        %v1624 = vmax.f32 %v1040, 0.0
        %v1625 = vmax.f32 %v1199, 0.0
        %v1626 = vmax.f32 %v1201, 0.0
        %v1627 = vmax.f32 %v1360, 0.0
        %v1628 = vmax.f32 %v1362, 0.0
        %v1629 = vmax.f32 %v1521, 0.0
        %v1630 = vmax.f32 %v1523, 0.0
        %v1631 = vmax.f32 %v1044, 0.0
        %v1632 = vmax.f32 %v1046, 0.0
        %v1633 = vmax.f32 %v1205, 0.0
        %v1634 = vmax.f32 %v1207, 0.0
        %v1635 = vmax.f32 %v1366, 0.0
        %v1636 = vmax.f32 %v1368, 0.0
        %v1637 = vmax.f32 %v1527, 0.0
        %v1638 = vmax.f32 %v1529, 0.0
        %v1639 = vmax.f32 %v1050, 0.0
        %v1640 = vmax.f32 %v1052, 0.0
        %v1641 = vmax.f32 %v1211, 0.0
        %v1642 = vmax.f32 %v1213, 0.0
        %v1643 = vmax.f32 %v1372, 0.0
        %v1644 = vmax.f32 %v1374, 0.0
        %v1645 = vmax.f32 %v1533, 0.0
        %v1646 = vmax.f32 %v1535, 0.0
        %v1647 = vmax.f32 %v1056, 0.0
        %v1648 = vmax.f32 %v1058, 0.0
        %v1649 = vmax.f32 %v1217, 0.0
        %v1650 = vmax.f32 %v1219, 0.0
        %v1651 = vmax.f32 %v1378, 0.0
        %v1652 = vmax.f32 %v1380, 0.0
        %v1653 = vmax.f32 %v1539, 0.0
        %v1654 = vmax.f32 %v1541, 0.0
        %v1655 = vmax.f32 %v1062, 0.0
        %v1656 = vmax.f32 %v1064, 0.0
        %v1657 = vmax.f32 %v1223, 0.0
        %v1658 = vmax.f32 %v1225, 0.0
        %v1659 = vmax.f32 %v1384, 0.0
        %v1660 = vmax.f32 %v1386, 0.0
        %v1661 = vmax.f32 %v1545, 0.0
        %v1662 = vmax.f32 %v1547, 0.0
        %v1663 = vmax.f32 %v1068, 0.0
        %v1664 = vmax.f32 %v1070, 0.0
        %v1665 = vmax.f32 %v1229, 0.0
        %v1666 = vmax.f32 %v1231, 0.0
        %v1667 = vmax.f32 %v1390, 0.0
        %v1668 = vmax.f32 %v1392, 0.0
        %v1669 = vmax.f32 %v1551, 0.0
        %v1670 = vmax.f32 %v1553, 0.0
        %v1671 = vmax.f32 %v1074, 0.0
        %v1672 = vmax.f32 %v1076, 0.0
        %v1673 = vmax.f32 %v1235, 0.0
        %v1674 = vmax.f32 %v1237, 0.0
        %v1675 = vmax.f32 %v1396, 0.0
        %v1676 = vmax.f32 %v1398, 0.0
        %v1677 = vmax.f32 %v1557, 0.0
        %v1678 = vmax.f32 %v1559, 0.0
        %v1679 = vmax.f32 %v1080, 0.0
        %v1680 = vmax.f32 %v1082, 0.0
        %v1681 = vmax.f32 %v1241, 0.0
        %v1682 = vmax.f32 %v1243, 0.0
        %v1683 = vmax.f32 %v1402, 0.0
        %v1684 = vmax.f32 %v1404, 0.0
        %v1685 = vmax.f32 %v1563, 0.0
        %v1686 = vmax.f32 %v1565, 0.0
        %v1687 = vmax.f32 %v1086, 0.0
        %v1688 = vmax.f32 %v1088, 0.0
        %v1689 = vmax.f32 %v1247, 0.0
        %v1690 = vmax.f32 %v1249, 0.0
        %v1691 = vmax.f32 %v1408, 0.0
        %v1692 = vmax.f32 %v1410, 0.0
        %v1693 = vmax.f32 %v1569, 0.0
        %v1694 = vmax.f32 %v1571, 0.0
        %v1695 = vmax.f32 %v1092, 0.0
        %v1696 = vmax.f32 %v1094, 0.0
        %v1697 = vmax.f32 %v1253, 0.0
        %v1698 = vmax.f32 %v1255, 0.0
        %v1699 = vmax.f32 %v1414, 0.0
        %v1700 = vmax.f32 %v1416, 0.0
        %v1701 = vmax.f32 %v1575, 0.0
        %v1702 = vmax.f32 %v1577, 0.0
        %v1703 = vmax.f32 %v1098, 0.0
        %v1704 = vmax.f32 %v1100, 0.0
        %v1705 = vmax.f32 %v1259, 0.0
        %v1706 = vmax.f32 %v1261, 0.0
        %v1707 = vmax.f32 %v1420, 0.0
        %v1708 = vmax.f32 %v1422, 0.0
        %v1709 = vmax.f32 %v1581, 0.0
        %v1710 = vmax.f32 %v1583, 0.0
        %v1711 = vmax.f32 %v1104, 0.0
        %v1712 = vmax.f32 %v1106, 0.0
        %v1713 = vmax.f32 %v1265, 0.0
        %v1714 = vmax.f32 %v1267, 0.0
        %v1715 = vmax.f32 %v1426, 0.0
        %v1716 = vmax.f32 %v1428, 0.0
        %v1717 = vmax.f32 %v1587, 0.0
        %v1718 = vmax.f32 %v1589, 0.0
        %1719 = vset.pattern.permute.xlu0 1
        %1720 = vperm.xlu0 %1719, %v802
        %v1721 = vpop.permute.xlu0 %1720
        %1723 = vset.pattern.permute.xlu0 1
        %1724 = vperm.xlu0 %1723, %v803
        %v1725 = vpop.permute.xlu0 %1724
        %1727 = vset.pattern.permute.xlu0 1
        %1728 = vperm.xlu0 %1727, %v804
        %v1729 = vpop.permute.xlu0 %1728
        %1731 = vset.pattern.permute.xlu0 1
        %1732 = vperm.xlu0 %1731, %v805
        %v1733 = vpop.permute.xlu0 %1732
        %1735 = vset.pattern.permute.xlu0 1
        %1736 = vperm.xlu0 %1735, %v806
        %v1737 = vpop.permute.xlu0 %1736
        %1739 = vset.pattern.permute.xlu0 1
        %1740 = vperm.xlu0 %1739, %v807
        %v1741 = vpop.permute.xlu0 %1740
        %1743 = vset.pattern.permute.xlu0 1
        %1744 = vperm.xlu0 %1743, %v808
        %v1745 = vpop.permute.xlu0 %1744
        %1747 = vset.pattern.permute.xlu0 1
        %1748 = vperm.xlu0 %1747, %v809
        %v1749 = vpop.permute.xlu0 %1748
        %1751 = vset.pattern.permute.xlu0 1
        %1752 = vperm.xlu0 %1751, %v810
        %v1753 = vpop.permute.xlu0 %1752
        %1755 = vset.pattern.permute.xlu0 1
        %1756 = vperm.xlu0 %1755, %v811
        %v1757 = vpop.permute.xlu0 %1756
        %1759 = vset.pattern.permute.xlu0 1
        %1760 = vperm.xlu0 %1759, %v812
        %v1761 = vpop.permute.xlu0 %1760
        %1763 = vset.pattern.permute.xlu0 1
        %1764 = vperm.xlu0 %1763, %v813
        %v1765 = vpop.permute.xlu0 %1764
        %1767 = vset.pattern.permute.xlu0 1
        %1768 = vperm.xlu0 %1767, %v814
        %v1769 = vpop.permute.xlu0 %1768
        %1771 = vset.pattern.permute.xlu0 1
        %1772 = vperm.xlu0 %1771, %v815
        %v1773 = vpop.permute.xlu0 %1772
        %1775 = vset.pattern.permute.xlu0 1
        %1776 = vperm.xlu0 %1775, %v816
        %v1777 = vpop.permute.xlu0 %1776
        %1779 = vset.pattern.permute.xlu0 1
        %1780 = vperm.xlu0 %1779, %v817
        %v1781 = vpop.permute.xlu0 %1780
        %v1783 = vmul.f32 %v1721, %v1591
        %v1784 = vmul.f32 %v1721, %v1592
        %v1785 = vmul.f32 %v1721, %v1593
        %v1786 = vmul.f32 %v1721, %v1594
        %v1787 = vmul.f32 %v1721, %v1595
        %v1788 = vmul.f32 %v1721, %v1596
        %v1789 = vmul.f32 %v1721, %v1597
        %v1790 = vmul.f32 %v1721, %v1598
        %v1791 = vmul.f32 %v1725, %v1599
        %v1792 = vmul.f32 %v1725, %v1600
        %v1793 = vmul.f32 %v1725, %v1601
        %v1794 = vmul.f32 %v1725, %v1602
        %v1795 = vmul.f32 %v1725, %v1603
        %v1796 = vmul.f32 %v1725, %v1604
        %v1797 = vmul.f32 %v1725, %v1605
        %v1798 = vmul.f32 %v1725, %v1606
        %v1799 = vmul.f32 %v1729, %v1607
        %v1800 = vmul.f32 %v1729, %v1608
        %v1801 = vmul.f32 %v1729, %v1609
        %v1802 = vmul.f32 %v1729, %v1610
        %v1803 = vmul.f32 %v1729, %v1611
        %v1804 = vmul.f32 %v1729, %v1612
        %v1805 = vmul.f32 %v1729, %v1613
        %v1806 = vmul.f32 %v1729, %v1614
        %v1807 = vmul.f32 %v1733, %v1615
        %v1808 = vmul.f32 %v1733, %v1616
        %v1809 = vmul.f32 %v1733, %v1617
        %v1810 = vmul.f32 %v1733, %v1618
        %v1811 = vmul.f32 %v1733, %v1619
        %v1812 = vmul.f32 %v1733, %v1620
        %v1813 = vmul.f32 %v1733, %v1621
        %v1814 = vmul.f32 %v1733, %v1622
        %v1815 = vmul.f32 %v1737, %v1623
        %v1816 = vmul.f32 %v1737, %v1624
        %v1817 = vmul.f32 %v1737, %v1625
        %v1818 = vmul.f32 %v1737, %v1626
        %v1819 = vmul.f32 %v1737, %v1627
        %v1820 = vmul.f32 %v1737, %v1628
        %v1821 = vmul.f32 %v1737, %v1629
        %v1822 = vmul.f32 %v1737, %v1630
        %v1823 = vmul.f32 %v1741, %v1631
        %v1824 = vmul.f32 %v1741, %v1632
        %v1825 = vmul.f32 %v1741, %v1633
        %v1826 = vmul.f32 %v1741, %v1634
        %v1827 = vmul.f32 %v1741, %v1635
        %v1828 = vmul.f32 %v1741, %v1636
        %v1829 = vmul.f32 %v1741, %v1637
        %v1830 = vmul.f32 %v1741, %v1638
        %v1831 = vmul.f32 %v1745, %v1639
        %v1832 = vmul.f32 %v1745, %v1640
        %v1833 = vmul.f32 %v1745, %v1641
        %v1834 = vmul.f32 %v1745, %v1642
        %v1835 = vmul.f32 %v1745, %v1643
        %v1836 = vmul.f32 %v1745, %v1644
        %v1837 = vmul.f32 %v1745, %v1645
        %v1838 = vmul.f32 %v1745, %v1646
        %v1839 = vmul.f32 %v1749, %v1647
        %v1840 = vmul.f32 %v1749, %v1648
        %v1841 = vmul.f32 %v1749, %v1649
        %v1842 = vmul.f32 %v1749, %v1650
        %v1843 = vmul.f32 %v1749, %v1651
        %v1844 = vmul.f32 %v1749, %v1652
        %v1845 = vmul.f32 %v1749, %v1653
        %v1846 = vmul.f32 %v1749, %v1654
        %v1847 = vmul.f32 %v1753, %v1655
        %v1848 = vmul.f32 %v1753, %v1656
        %v1849 = vmul.f32 %v1753, %v1657
        %v1850 = vmul.f32 %v1753, %v1658
        %v1851 = vmul.f32 %v1753, %v1659
        %v1852 = vmul.f32 %v1753, %v1660
        %v1853 = vmul.f32 %v1753, %v1661
        %v1854 = vmul.f32 %v1753, %v1662
        %v1855 = vmul.f32 %v1757, %v1663
        %v1856 = vmul.f32 %v1757, %v1664
        %v1857 = vmul.f32 %v1757, %v1665
        %v1858 = vmul.f32 %v1757, %v1666
        %v1859 = vmul.f32 %v1757, %v1667
        %v1860 = vmul.f32 %v1757, %v1668
        %v1861 = vmul.f32 %v1757, %v1669
        %v1862 = vmul.f32 %v1757, %v1670
        %v1863 = vmul.f32 %v1761, %v1671
        %v1864 = vmul.f32 %v1761, %v1672
        %v1865 = vmul.f32 %v1761, %v1673
        %v1866 = vmul.f32 %v1761, %v1674
        %v1867 = vmul.f32 %v1761, %v1675
        %v1868 = vmul.f32 %v1761, %v1676
        %v1869 = vmul.f32 %v1761, %v1677
        %v1870 = vmul.f32 %v1761, %v1678
        %v1871 = vmul.f32 %v1765, %v1679
        %v1872 = vmul.f32 %v1765, %v1680
        %v1873 = vmul.f32 %v1765, %v1681
        %v1874 = vmul.f32 %v1765, %v1682
        %v1875 = vmul.f32 %v1765, %v1683
        %v1876 = vmul.f32 %v1765, %v1684
        %v1877 = vmul.f32 %v1765, %v1685
        %v1878 = vmul.f32 %v1765, %v1686
        %v1879 = vmul.f32 %v1769, %v1687
        %v1880 = vmul.f32 %v1769, %v1688
        %v1881 = vmul.f32 %v1769, %v1689
        %v1882 = vmul.f32 %v1769, %v1690
        %v1883 = vmul.f32 %v1769, %v1691
        %v1884 = vmul.f32 %v1769, %v1692
        %v1885 = vmul.f32 %v1769, %v1693
        %v1886 = vmul.f32 %v1769, %v1694
        %v1887 = vmul.f32 %v1773, %v1695
        %v1888 = vmul.f32 %v1773, %v1696
        %v1889 = vmul.f32 %v1773, %v1697
        %v1890 = vmul.f32 %v1773, %v1698
        %v1891 = vmul.f32 %v1773, %v1699
        %v1892 = vmul.f32 %v1773, %v1700
        %v1893 = vmul.f32 %v1773, %v1701
        %v1894 = vmul.f32 %v1773, %v1702
        %v1895 = vmul.f32 %v1777, %v1703
        %v1896 = vmul.f32 %v1777, %v1704
        %v1897 = vmul.f32 %v1777, %v1705
        %v1898 = vmul.f32 %v1777, %v1706
        %v1899 = vmul.f32 %v1777, %v1707
        %v1900 = vmul.f32 %v1777, %v1708
        %v1901 = vmul.f32 %v1777, %v1709
        %v1902 = vmul.f32 %v1777, %v1710
        %v1903 = vmul.f32 %v1781, %v1711
        %v1904 = vmul.f32 %v1781, %v1712
        %v1905 = vmul.f32 %v1781, %v1713
        %v1906 = vmul.f32 %v1781, %v1714
        %v1907 = vmul.f32 %v1781, %v1715
        %v1908 = vmul.f32 %v1781, %v1716
        %v1909 = vmul.f32 %v1781, %v1717
        %v1910 = vmul.f32 %v1781, %v1718
        %v1911 = vadd.f32 %v1783, %v1791
        %v1912 = vadd.f32 %v1911, %v1799
        %v1913 = vadd.f32 %v1912, %v1807
        %v1914 = vadd.f32 %v1913, %v1815
        %v1915 = vadd.f32 %v1914, %v1823
        %v1916 = vadd.f32 %v1915, %v1831
        %v1917 = vadd.f32 %v1916, %v1839
        %v1918 = vadd.f32 %v1917, %v1847
        %v1919 = vadd.f32 %v1918, %v1855
        %v1920 = vadd.f32 %v1919, %v1863
        %v1921 = vadd.f32 %v1920, %v1871
        %v1922 = vadd.f32 %v1921, %v1879
        %v1923 = vadd.f32 %v1922, %v1887
        %v1924 = vadd.f32 %v1923, %v1895
        %v1925 = vadd.f32 %v1924, %v1903
        %v1926 = vrot.slane %v1925, 4
        %v1927 = vadd.f32 %v1925, %v1926
        %v1928 = vrot.slane %v1927, 2
        %v1929 = vadd.f32 %v1927, %v1928
        %v1930 = vrot.slane %v1929, 1
        %v1931 = vadd.f32 %v1929, %v1930
        %v1932 = vadd.f32 %v1784, %v1792
        %v1933 = vadd.f32 %v1932, %v1800
        %v1934 = vadd.f32 %v1933, %v1808
        %v1935 = vadd.f32 %v1934, %v1816
        %v1936 = vadd.f32 %v1935, %v1824
        %v1937 = vadd.f32 %v1936, %v1832
        %v1938 = vadd.f32 %v1937, %v1840
        %v1939 = vadd.f32 %v1938, %v1848
        %v1940 = vadd.f32 %v1939, %v1856
        %v1941 = vadd.f32 %v1940, %v1864
        %v1942 = vadd.f32 %v1941, %v1872
        %v1943 = vadd.f32 %v1942, %v1880
        %v1944 = vadd.f32 %v1943, %v1888
        %v1945 = vadd.f32 %v1944, %v1896
        %v1946 = vadd.f32 %v1945, %v1904
        %v1947 = vrot.slane %v1946, 4
        %v1948 = vadd.f32 %v1946, %v1947
        %v1949 = vrot.slane %v1948, 2
        %v1950 = vadd.f32 %v1948, %v1949
        %v1951 = vrot.slane %v1950, 1
        %v1952 = vadd.f32 %v1950, %v1951
        %v1953 = vadd.f32 %v1785, %v1793
        %v1954 = vadd.f32 %v1953, %v1801
        %v1955 = vadd.f32 %v1954, %v1809
        %v1956 = vadd.f32 %v1955, %v1817
        %v1957 = vadd.f32 %v1956, %v1825
        %v1958 = vadd.f32 %v1957, %v1833
        %v1959 = vadd.f32 %v1958, %v1841
        %v1960 = vadd.f32 %v1959, %v1849
        %v1961 = vadd.f32 %v1960, %v1857
        %v1962 = vadd.f32 %v1961, %v1865
        %v1963 = vadd.f32 %v1962, %v1873
        %v1964 = vadd.f32 %v1963, %v1881
        %v1965 = vadd.f32 %v1964, %v1889
        %v1966 = vadd.f32 %v1965, %v1897
        %v1967 = vadd.f32 %v1966, %v1905
        %v1968 = vrot.slane %v1967, 4
        %v1969 = vadd.f32 %v1967, %v1968
        %v1970 = vrot.slane %v1969, 2
        %v1971 = vadd.f32 %v1969, %v1970
        %v1972 = vrot.slane %v1971, 1
        %v1973 = vadd.f32 %v1971, %v1972
        %v1974 = vadd.f32 %v1786, %v1794
        %v1975 = vadd.f32 %v1974, %v1802
        %v1976 = vadd.f32 %v1975, %v1810
        %v1977 = vadd.f32 %v1976, %v1818
        %v1978 = vadd.f32 %v1977, %v1826
        %v1979 = vadd.f32 %v1978, %v1834
        %v1980 = vadd.f32 %v1979, %v1842
        %v1981 = vadd.f32 %v1980, %v1850
        %v1982 = vadd.f32 %v1981, %v1858
        %v1983 = vadd.f32 %v1982, %v1866
        %v1984 = vadd.f32 %v1983, %v1874
        %v1985 = vadd.f32 %v1984, %v1882
        %v1986 = vadd.f32 %v1985, %v1890
        %v1987 = vadd.f32 %v1986, %v1898
        %v1988 = vadd.f32 %v1987, %v1906
        %v1989 = vrot.slane %v1988, 4
        %v1990 = vadd.f32 %v1988, %v1989
        %v1991 = vrot.slane %v1990, 2
        %v1992 = vadd.f32 %v1990, %v1991
        %v1993 = vrot.slane %v1992, 1
        %v1994 = vadd.f32 %v1992, %v1993
        %v1995 = vadd.f32 %v1787, %v1795
        %v1996 = vadd.f32 %v1995, %v1803
        %v1997 = vadd.f32 %v1996, %v1811
        %v1998 = vadd.f32 %v1997, %v1819
        %v1999 = vadd.f32 %v1998, %v1827
        %v2000 = vadd.f32 %v1999, %v1835
        %v2001 = vadd.f32 %v2000, %v1843
        %v2002 = vadd.f32 %v2001, %v1851
        %v2003 = vadd.f32 %v2002, %v1859
        %v2004 = vadd.f32 %v2003, %v1867
        %v2005 = vadd.f32 %v2004, %v1875
        %v2006 = vadd.f32 %v2005, %v1883
        %v2007 = vadd.f32 %v2006, %v1891
        %v2008 = vadd.f32 %v2007, %v1899
        %v2009 = vadd.f32 %v2008, %v1907
        %v2010 = vrot.slane %v2009, 4
        %v2011 = vadd.f32 %v2009, %v2010
        %v2012 = vrot.slane %v2011, 2
        %v2013 = vadd.f32 %v2011, %v2012
        %v2014 = vrot.slane %v2013, 1
        %v2015 = vadd.f32 %v2013, %v2014
        %v2016 = vadd.f32 %v1788, %v1796
        %v2017 = vadd.f32 %v2016, %v1804
        %v2018 = vadd.f32 %v2017, %v1812
        %v2019 = vadd.f32 %v2018, %v1820
        %v2020 = vadd.f32 %v2019, %v1828
        %v2021 = vadd.f32 %v2020, %v1836
        %v2022 = vadd.f32 %v2021, %v1844
        %v2023 = vadd.f32 %v2022, %v1852
        %v2024 = vadd.f32 %v2023, %v1860
        %v2025 = vadd.f32 %v2024, %v1868
        %v2026 = vadd.f32 %v2025, %v1876
        %v2027 = vadd.f32 %v2026, %v1884
        %v2028 = vadd.f32 %v2027, %v1892
        %v2029 = vadd.f32 %v2028, %v1900
        %v2030 = vadd.f32 %v2029, %v1908
        %v2031 = vrot.slane %v2030, 4
        %v2032 = vadd.f32 %v2030, %v2031
        %v2033 = vrot.slane %v2032, 2
        %v2034 = vadd.f32 %v2032, %v2033
        %v2035 = vrot.slane %v2034, 1
        %v2036 = vadd.f32 %v2034, %v2035
        %v2037 = vadd.f32 %v1789, %v1797
        %v2038 = vadd.f32 %v2037, %v1805
        %v2039 = vadd.f32 %v2038, %v1813
        %v2040 = vadd.f32 %v2039, %v1821
        %v2041 = vadd.f32 %v2040, %v1829
        %v2042 = vadd.f32 %v2041, %v1837
        %v2043 = vadd.f32 %v2042, %v1845
        %v2044 = vadd.f32 %v2043, %v1853
        %v2045 = vadd.f32 %v2044, %v1861
        %v2046 = vadd.f32 %v2045, %v1869
        %v2047 = vadd.f32 %v2046, %v1877
        %v2048 = vadd.f32 %v2047, %v1885
        %v2049 = vadd.f32 %v2048, %v1893
        %v2050 = vadd.f32 %v2049, %v1901
        %v2051 = vadd.f32 %v2050, %v1909
        %v2052 = vrot.slane %v2051, 4
        %v2053 = vadd.f32 %v2051, %v2052
        %v2054 = vrot.slane %v2053, 2
        %v2055 = vadd.f32 %v2053, %v2054
        %v2056 = vrot.slane %v2055, 1
        %v2057 = vadd.f32 %v2055, %v2056
        %v2058 = vadd.f32 %v1790, %v1798
        %v2059 = vadd.f32 %v2058, %v1806
        %v2060 = vadd.f32 %v2059, %v1814
        %v2061 = vadd.f32 %v2060, %v1822
        %v2062 = vadd.f32 %v2061, %v1830
        %v2063 = vadd.f32 %v2062, %v1838
        %v2064 = vadd.f32 %v2063, %v1846
        %v2065 = vadd.f32 %v2064, %v1854
        %v2066 = vadd.f32 %v2065, %v1862
        %v2067 = vadd.f32 %v2066, %v1870
        %v2068 = vadd.f32 %v2067, %v1878
        %v2069 = vadd.f32 %v2068, %v1886
        %v2070 = vadd.f32 %v2069, %v1894
        %v2071 = vadd.f32 %v2070, %v1902
        %v2072 = vadd.f32 %v2071, %v1910
        %v2073 = vrot.slane %v2072, 4
        %v2074 = vadd.f32 %v2072, %v2073
        %v2075 = vrot.slane %v2074, 2
        %v2076 = vadd.f32 %v2074, %v2075
        %v2077 = vrot.slane %v2076, 1
        %v2078 = vadd.f32 %v2076, %v2077
        %s2079 = sld [smem:[#allocation2]]
        %v2080 = vstv %s2079
        %v2081 = vadd.f32 %v1931, %v2080
        %v2082 = vadd.f32 %v1952, %v2080
        %v2083 = vadd.f32 %v1973, %v2080
        %v2084 = vadd.f32 %v1994, %v2080
        %v2085 = vadd.f32 %v2015, %v2080
        %v2086 = vadd.f32 %v2036, %v2080
        %v2087 = vadd.f32 %v2057, %v2080
        %v2088 = vadd.f32 %v2078, %v2080
        %v2097 = vcombine.low %v2081, %v2082
        %v2098 = vcombine.low %v2083, %v2084
        %v2099 = vcombine.low %v2085, %v2086
        %v2100 = vcombine.low %v2087, %v2088
        %v2102 = vunpack.c.l.s4 1966171168
        %v2103 = vunpack.c.0.s8 %v2102
        %v2104 = vlaneseq
        %v2105 = vshrl.u32 %v2104, 7
        %v2106 = vsub.s32 %v2103, %v2105
        %v2107 = vrot.slane %v2097, %v2106
        %v2109 = vunpack.c.l.s4 1966171168
        %v2110 = vunpack.c.0.s8 %v2109
        %v2111 = vlaneseq
        %v2112 = vshrl.u32 %v2111, 7
        %v2113 = vsub.s32 %v2110, %v2112
        %v2114 = vrot.slane %v2098, %v2113
        %v2116 = vunpack.c.l.s4 1966171168
        %v2117 = vunpack.c.0.s8 %v2116
        %v2118 = vlaneseq
        %v2119 = vshrl.u32 %v2118, 7
        %v2120 = vsub.s32 %v2117, %v2119
        %v2121 = vrot.slane %v2099, %v2120
        %v2123 = vunpack.c.l.s4 1966171168
        %v2124 = vunpack.c.0.s8 %v2123
        %v2125 = vlaneseq
        %v2126 = vshrl.u32 %v2125, 7
        %v2127 = vsub.s32 %v2124, %v2126
        %v2128 = vrot.slane %v2100, %v2127
        %v2129 = vcombine.low %v2107, %v2114
        %v2130 = vcombine.low %v2121, %v2128
        %v2132 = vunpack.c.l.s4 1966171168
        %v2133 = vunpack.c.0.s8 %v2132
        %v2134 = vlaneseq
        %v2135 = vshrl.u32 %v2134, 7
        %v2136 = vsub.s32 %v2133, %v2135
        %v2137 = vrot.slane %v2129, %v2136
        %v2139 = vunpack.c.l.s4 1966171168
        %v2140 = vunpack.c.0.s8 %v2139
        %v2141 = vlaneseq
        %v2142 = vshrl.u32 %v2141, 7
        %v2143 = vsub.s32 %v2140, %v2142
        %v2144 = vrot.slane %v2130, %v2143
        %v2145 = vcombine.low %v2137, %v2144
        %2147 = vst [vmem:[%s258] sm:$0xff] %v2145
        %s2148 = sand.u32 %s165, 1
        %s2149 = scalar_lea.sflag [#allocation4], %s2148
        %s2150 = sand.u32 %s165, 1
        %s2151 = smul.addr %s2150, 8
        %s2152 = scalar_lea.vmem [#allocation3], %s2151
        // Predicated region
        $region45: #{dumb_linear_forward.1} parent=43 // pred_check
          %p2153 = pneg %p175
        $region46: #{dumb_linear_forward.1} parent=43 // pred_check_branch
          %2155 = sbr.rel (%p2153) target = $region48
        $region47: #{dumb_linear_forward.1} parent=43 // pred_region
          %s2156 = smul.u32 8, %s21
          %s2158 = ssub.s32 128, 128
          %2159 = vsyncadd %s2149, %s2158
          %s2160 = smul.addr %s2156, 16
          %s2161 = scalar_lea.hbm %s6, %s2160
          %s2163 = sshll.u32 %s2152, 4
          %s2164 = int_to_ptr.vmem [resolvable:$true] %s2163
          %2166 = dma.vmem_to_hbm [thread:$0]  %s2164, 128, %s2161, %s2149
        $region48: #{dumb_linear_forward.1} parent=43 // pred_fallthru
          _
      $region44: #{dumb_linear_forward.1} parent=5 // pred_fallthru
        _
      %p2167 = scmp.le.s32.totalorder 2, %s16
      // Predicated region
      $region49: #{dumb_linear_forward.1} parent=5 // pred_check
        %p2168 = pneg %p2167
      $region50: #{dumb_linear_forward.1} parent=5 // pred_check_branch
        %2170 = sbr.rel (%p2168) target = $region52
      $region51: #{dumb_linear_forward.1} parent=5 // pred_region
        %s2171 = ssub.s32 %s16, 2
        // Predicated region
        $region53: #{dumb_linear_forward.1} parent=51 // pred_check
          %p2172 = pneg %p181
        $region54: #{dumb_linear_forward.1} parent=51 // pred_check_branch
          %2174 = sbr.rel (%p2172) target = $region56
        $region55: #{dumb_linear_forward.1} parent=51 // pred_region
          %s2175 = sand.u32 %s166, 1
          %s2176 = scalar_lea.sflag [#allocation4], %s2175
          %s2177 = sand.u32 %s166, 1
          %s2178 = smul.addr %s2177, 8
          %s2179 = scalar_lea.vmem [#allocation3], %s2178
          %2180 = dma.done %s2176, 128
        $region56: #{dumb_linear_forward.1} parent=51 // pred_fallthru
          _
      $region52: #{dumb_linear_forward.1} parent=5 // pred_fallthru
        _
    $region6: #{dumb_linear_forward.1} parent=1 // loop_footer
      %s20 = sadd.s32 1, %s16
    $region7: #{dumb_linear_forward.1} parent=1 // loop_footer_branch
      %15 = sbr.rel target = $region3
    $region8: #{dumb_linear_forward.1} parent=1 // loop_exit
      _
    %2181 = vsyncpa [#allocation4], 1
    %s2182 = scalar_lea.sflag [#allocation4], 1
    %2183 = vsyncpa %s2182, 1

</llo_original>
